<compile_context>
chip_gen: v5e
topology: v5e:2x2
jax: 0.10.0
libtpu: 0.0.40
codegen_flags: <defaults>
</compile_context>

<pallas_src>
import functools
import math

import jax
import jax.numpy as jnp
from jax.experimental import pallas as pl
from jax.experimental.pallas import tpu as pltpu


# ------------------------------ layernorm --------------------------------------


def _layernorm(x, gamma, beta, eps=1e-12):
    # Matches the torch module: unbiased (N-1) std, divide by (std + eps).
    mean = jnp.mean(x, axis=-1, keepdims=True)
    var = jnp.sum((x - mean) ** 2, axis=-1, keepdims=True) / float(x.shape[-1] - 1)
    std = jnp.sqrt(var)
    return gamma * ((x - mean) / (std + eps)) + beta


# ------------------------------ fused stack kernel -----------------------------


def encoder_stack_kernel(n_heads,
                         x_ref, ftw_ref, ftb_ref,
                         wq_ref, wk_ref, wv_ref, wo_ref, w1_ref, w2_ref,
                         small_ref, b1_ref,
                         trg_ref, attn_ref):
    layer = pl.program_id(1)
    last_layer = pl.num_programs(1) - 1

    Bb, S, H = trg_ref.shape
    n_rows = Bb * S
    dh = H // n_heads
    inv_scale = 1.0 / math.sqrt(dh)

    # ---- layer 0: fused initial feature linear seeds the resident activation --
    @pl.when(layer == 0)
    def _():
        xr = x_ref[...].reshape(n_rows, x_ref.shape[-1]).astype(jnp.bfloat16)
        ft = jnp.dot(xr, ftw_ref[...], preferred_element_type=jnp.float32) + ftb_ref[...]
        trg_ref[...] = ft.reshape(Bb, S, H)

    x2d = trg_ref[...].reshape(n_rows, H)           # [Bb*S, H] f32, resident block
    xb = x2d.astype(jnp.bfloat16)

    # ---- packed small params: [9, H] = (bq,bk,bv,bo,g1,be1,b2,g2,be2) ---------
    sm = small_ref[0]
    bq, bk, bv, bo = sm[0:1, :], sm[1:2, :], sm[2:3, :], sm[3:4, :]
    g1, be1 = sm[4:5, :], sm[5:6, :]
    b2, g2, be2 = sm[6:7, :], sm[7:8, :], sm[8:9, :]
    b1 = b1_ref[0]                                  # [1, pf_dim]

    # ---- QKV projections: batch rows folded into MXU M dim (bf16 in, f32 acc) -
    q = jnp.dot(xb, wq_ref[0], preferred_element_type=jnp.float32) + bq
    k = jnp.dot(xb, wk_ref[0], preferred_element_type=jnp.float32) + bk
    v = jnp.dot(xb, wv_ref[0], preferred_element_type=jnp.float32) + bv

    # ---- attention per batch element (heads batched on the MXU) ---------------
    sa_parts = []
    attn_parts = []
    for b in range(Bb):                             # static unroll over batch block
        rows = slice(b * S, (b + 1) * S)

        def heads(arr):                             # [S, H] -> [n_heads, S, dh]
            return jnp.transpose(
                arr[rows].reshape(S, n_heads, dh), (1, 0, 2)).astype(jnp.bfloat16)

        qh, kh, vh = heads(q), heads(k), heads(v)
        energy = jnp.einsum("hqd,hkd->hqk", qh, kh,
                            preferred_element_type=jnp.float32) * inv_scale
        energy = energy - jnp.max(energy, axis=-1, keepdims=True)
        p = jnp.exp(energy)
        attn = p * pl.reciprocal(jnp.sum(p, axis=-1, keepdims=True), approx=True)
        attn_parts.append(attn)

        ctx = jnp.einsum("hqk,hkd->hqd", attn.astype(jnp.bfloat16), vh,
                         preferred_element_type=jnp.float32)      # [h, S, dh]
        sa_parts.append(jnp.transpose(ctx, (1, 0, 2)).reshape(S, H))

    # The torch Encoder loop keeps only the last layer's attention.
    @pl.when(layer == last_layer)
    def _():
        for b in range(Bb):
            attn_ref[b] = attn_parts[b]

    sa = sa_parts[0] if Bb == 1 else jnp.concatenate(sa_parts, axis=0)  # [Bb*S, H]
    sa = jnp.dot(sa.astype(jnp.bfloat16), wo_ref[0],
                 preferred_element_type=jnp.float32) + bo

    # ---- residual + LN1 --------------------------------------------------------
    t = _layernorm(x2d + sa, g1, be1)

    # ---- positionwise feedforward (Conv1d k=1 == per-position linear) ---------
    h1 = jnp.maximum(
        jnp.dot(t.astype(jnp.bfloat16), w1_ref[0],
                preferred_element_type=jnp.float32) + b1, 0.0)
    ff = jnp.dot(h1.astype(jnp.bfloat16), w2_ref[0],
                 preferred_element_type=jnp.float32) + b2

    # ---- residual + LN2 -> resident activation for the next layer -------------
    trg_ref[...] = _layernorm(t + ff, g2, be2).reshape(Bb, S, H)


# ------------------------------ wrapper helpers ---------------------------------

_MATMUL_WEIGHTS = ["wq", "wk", "wv", "wo", "w1", "w2"]
_SMALL_ORDER = ["bq", "bk", "bv", "bo", "g1", "be1", "b2", "g2", "be2"]


def _stack_layer_params(layer_params):
    stacked = {}
    for name in _MATMUL_WEIGHTS:
        # bf16 weight streaming halves weight DMA / VMEM; f32 accumulation in-kernel.
        stacked[name] = jnp.stack([p[name] for p in layer_params], 0).astype(jnp.bfloat16)
    # Pack the nine [1, H] bias/LN params into one [L, 9, H] array -> one DMA
    # descriptor per layer instead of nine tiny transfers.
    stacked["small"] = jnp.stack(
        [jnp.concatenate([p[n] for n in _SMALL_ORDER], axis=0) for p in layer_params], 0
    ).astype(jnp.float32)
    stacked["b1"] = jnp.stack([p["b1"] for p in layer_params], 0).astype(jnp.float32)
    return stacked


def _vmem_limit_bytes():
    # v5e/v6e: 128 MiB physical VMEM; v7x: 64 MiB. Budget ~75% of what this chip
    # actually has (fallback 64 MiB -> 48 MiB limit, safe on every generation).
    try:
        cap = pltpu.get_tpu_info().vmem_capacity_bytes
    except Exception:
        cap = 64 * 1024 * 1024
    return max(32 * 1024 * 1024, min(100 * 1024 * 1024, int(cap) * 3 // 4))


def _estimate_stack_vmem(bb, S, D, H, P, nh):
    f32, bf16 = 4, 2
    resident = bb * S * H * f32 + bb * nh * S * S * f32 + bb * S * D * f32
    ft = D * H * bf16 + H * f32
    per_layer_w = (4 * H * H + 2 * H * P) * bf16 + (9 * H + P) * f32
    weights = 2 * per_layer_w                    # double-buffered weight stream
    # Rough bound on in-kernel temporaries (q/k/v/sa/t/ff, energy/p/attn, h1).
    temps = bb * S * H * f32 * 8 + bb * nh * S * S * f32 * 4 + bb * S * P * f32 * 2
    return resident + ft + weights + temps


def _choose_batch_block(B, S, D, H, P, nh, vmem_budget):
    best = 1
    for bb in range(1, min(B, 8) + 1):           # cap unroll of per-element attention
        if B % bb == 0 and _estimate_stack_vmem(bb, S, D, H, P, nh) <= vmem_budget:
            best = bb
    return best


def encoder_forward(x, ft_w, ft_b, layer_params, n_heads, batch_block=None):
    B, S, D = x.shape
    H = ft_w.shape[1]
    P = layer_params[0]["w1"].shape[1]
    L = len(layer_params)
    assert H % n_heads == 0, "hid_dim must be divisible by n_heads"

    vmem_limit = _vmem_limit_bytes()
    if batch_block is None:
        batch_block = _choose_batch_block(B, S, D, H, P, n_heads, vmem_limit // 2)
    assert B % batch_block == 0
    Bb = batch_block
    n_bblocks = B // Bb

    stacked = _stack_layer_params(layer_params)
    ft_w_bf16 = ft_w.astype(jnp.bfloat16)
    ft_b_f32 = ft_b.astype(jnp.float32).reshape(1, H)

    def lspec(arr):
        rest = arr.shape[1:]
        # Block index depends only on the layer axis -> weights are streamed once
        # per (batch-block, layer) and never re-fetched within a batch block.
        return pl.BlockSpec((1,) + rest, lambda bb_i, l, _nd=len(rest): (l,) + (0,) * _nd)

    in_specs = [
        pl.BlockSpec((Bb, S, D), lambda bb_i, l: (bb_i, 0, 0)),   # raw x (layer 0 only)
        pl.BlockSpec((D, H), lambda bb_i, l: (0, 0)),             # ft weight (bf16)
        pl.BlockSpec((1, H), lambda bb_i, l: (0, 0)),             # ft bias (f32)
        lspec(stacked["wq"]), lspec(stacked["wk"]), lspec(stacked["wv"]),
        lspec(stacked["wo"]), lspec(stacked["w1"]), lspec(stacked["w2"]),
        lspec(stacked["small"]), lspec(stacked["b1"]),
    ]
    # Output block indices constant across the layer axis -> resident in VMEM across
    # layers, flushed to HBM once per batch block.
    out_specs = (
        pl.BlockSpec((Bb, S, H), lambda bb_i, l: (bb_i, 0, 0)),
        pl.BlockSpec((Bb, n_heads, S, S), lambda bb_i, l: (bb_i, 0, 0, 0)),
    )
    out_shapes = (
        jax.ShapeDtypeStruct((B, S, H), jnp.float32),
        jax.ShapeDtypeStruct((B, n_heads, S, S), jnp.float32),
    )

    kernel = functools.partial(encoder_stack_kernel, n_heads)
    return pl.pallas_call(
        kernel,
        out_shape=out_shapes,
        grid=(n_bblocks, L),
        in_specs=in_specs,
        out_specs=out_specs,
        compiler_params=pltpu.CompilerParams(
            dimension_semantics=("parallel", "arbitrary"),
            vmem_limit_bytes=vmem_limit,
        ),
    )(x, ft_w_bf16, ft_b_f32,
      stacked["wq"], stacked["wk"], stacked["wv"],
      stacked["wo"], stacked["w1"], stacked["w2"],
      stacked["small"], stacked["b1"])


# ------------------------------ reference (pure JAX, f32) -----------------------


def encoder_forward_ref(x, ft_w, ft_b, layer_params, n_heads):
    trg = x @ ft_w + ft_b
    attention = None
    for p in layer_params:
        B, S, H = trg.shape
        dh = H // n_heads
        q = (trg @ p["wq"] + p["bq"]).reshape(B, S, n_heads, dh).transpose(0, 2, 1, 3)
        k = (trg @ p["wk"] + p["bk"]).reshape(B, S, n_heads, dh).transpose(0, 2, 1, 3)
        v = (trg @ p["wv"] + p["bv"]).reshape(B, S, n_heads, dh).transpose(0, 2, 1, 3)
        energy = jnp.einsum("bhqd,bhkd->bhqk", q, k) / jnp.sqrt(jnp.float32(dh))
        attention = jax.nn.softmax(energy, axis=-1)
        sa = jnp.einsum("bhqk,bhkd->bhqd", attention, v).transpose(0, 2, 1, 3).reshape(B, S, H)
        sa = sa @ p["wo"] + p["bo"]
        t = _layernorm(trg + sa, p["g1"], p["be1"])
        h1 = jnp.maximum(t @ p["w1"] + p["b1"], 0.0)
        ff = h1 @ p["w2"] + p["b2"]
        trg = _layernorm(t + ff, p["g2"], p["be2"])
    return trg, attention


# ------------------------------ params / main -----------------------------------


def make_params(key, dna_dim, hid_dim, pf_dim, n_layers):
    keys = jax.random.split(key, 2 + n_layers)
    ft_w = jax.random.normal(keys[0], (dna_dim, hid_dim), jnp.float32) * 0.1
    ft_b = jax.random.normal(keys[1], (1, hid_dim), jnp.float32) * 0.1

    layer_params = []
    for li in range(n_layers):
        lkeys = jax.random.split(keys[2 + li], 12)
        p = {
            "wq": jax.random.normal(lkeys[0], (hid_dim, hid_dim), jnp.float32) * 0.1,
            "bq": jax.random.normal(lkeys[1], (1, hid_dim), jnp.float32) * 0.1,
            "wk": jax.random.normal(lkeys[2], (hid_dim, hid_dim), jnp.float32) * 0.1,
            "bk": jax.random.normal(lkeys[3], (1, hid_dim), jnp.float32) * 0.1,
            "wv": jax.random.normal(lkeys[4], (hid_dim, hid_dim), jnp.float32) * 0.1,
            "bv": jax.random.normal(lkeys[5], (1, hid_dim), jnp.float32) * 0.1,
            "wo": jax.random.normal(lkeys[6], (hid_dim, hid_dim), jnp.float32) * 0.1,
            "bo": jax.random.normal(lkeys[7], (1, hid_dim), jnp.float32) * 0.1,
            "g1": jnp.ones((1, hid_dim), jnp.float32),
            "be1": jnp.zeros((1, hid_dim), jnp.float32),
            "w1": jax.random.normal(lkeys[8], (hid_dim, pf_dim), jnp.float32) * 0.1,
            "b1": jax.random.normal(lkeys[9], (1, pf_dim), jnp.float32) * 0.1,
            "w2": jax.random.normal(lkeys[10], (pf_dim, hid_dim), jnp.float32) * 0.1,
            "b2": jax.random.normal(lkeys[11], (1, hid_dim), jnp.float32) * 0.1,
            "g2": jnp.ones((1, hid_dim), jnp.float32),
            "be2": jnp.zeros((1, hid_dim), jnp.float32),
        }
        layer_params.append(p)
    return ft_w, ft_b, layer_params


if __name__ == "__main__":
    B, S = 2, 8
    dna_dim, hid_dim, pf_dim = 16, 32, 64
    n_heads, n_layers = 4, 2

    key = jax.random.PRNGKey(0)
    kx, kp = jax.random.split(key)
    x = jax.random.normal(kx, (B, S, dna_dim), jnp.float32)
    ft_w, ft_b, layer_params = make_params(kp, dna_dim, hid_dim, pf_dim, n_layers)

    out, attn = encoder_forward(x, ft_w, ft_b, layer_params, n_heads)
    out = jax.block_until_ready(out)
    attn = jax.block_until_ready(attn)

    ref_out, ref_attn = encoder_forward_ref(x, ft_w, ft_b, layer_params, n_heads)
    assert out.shape == (B, S, hid_dim)
    assert attn.shape == (B, n_heads, S, S)
    # Tolerances loosened vs. the pure-f32 reference because the kernel feeds the
    # MXU bf16 inputs (f32 accumulation) and uses an approx EUP reciprocal for the
    # softmax denominator.
    assert jnp.allclose(out, ref_out, rtol=5e-2, atol=5e-2), \
        float(jnp.max(jnp.abs(out - ref_out)))
    assert jnp.allclose(attn, ref_attn, rtol=5e-2, atol=5e-2), \
        float(jnp.max(jnp.abs(attn - ref_attn)))

    print("KERNEL_OK")
</pallas_src>

<mosaic_0001>
module attributes {stable_mosaic.version = 11 : i64} {
  func.func @encoder_stack_kernel(%arg0: i32, %arg1: i32, %arg2: memref<2x8x16xf32, #tpu.memory_space<vmem>>, %arg3: memref<16x32xbf16, #tpu.memory_space<vmem>>, %arg4: memref<1x32xf32, #tpu.memory_space<vmem>>, %arg5: memref<1x32x32xbf16, #tpu.memory_space<vmem>>, %arg6: memref<1x32x32xbf16, #tpu.memory_space<vmem>>, %arg7: memref<1x32x32xbf16, #tpu.memory_space<vmem>>, %arg8: memref<1x32x32xbf16, #tpu.memory_space<vmem>>, %arg9: memref<1x32x64xbf16, #tpu.memory_space<vmem>>, %arg10: memref<1x64x32xbf16, #tpu.memory_space<vmem>>, %arg11: memref<1x9x32xf32, #tpu.memory_space<vmem>>, %arg12: memref<1x1x64xf32, #tpu.memory_space<vmem>>, %arg13: memref<2x8x32xf32, #tpu.memory_space<vmem>>, %arg14: memref<2x4x8x8xf32, #tpu.memory_space<vmem>>) attributes {dimension_semantics = [#tpu.dimension_semantics<parallel>, #tpu.dimension_semantics<arbitrary>], iteration_bounds = array<i64: 1, 2>, scalar_prefetch = 0 : i64, scratch_operands = 0 : i64, tpu.core_type = #tpu.core_type<tc>, window_params = [{transform_indices = @transform_0, window_bounds = array<i64: 2, 8, 16>}, {pipeline_mode = #tpu.pipeline_mode<synchronous>, transform_indices = @transform_1, window_bounds = array<i64: 16, 32>}, {pipeline_mode = #tpu.pipeline_mode<synchronous>, transform_indices = @transform_2, window_bounds = array<i64: 1, 32>}, {transform_indices = @transform_3, window_bounds = array<i64: 1, 32, 32>}, {transform_indices = @transform_4, window_bounds = array<i64: 1, 32, 32>}, {transform_indices = @transform_5, window_bounds = array<i64: 1, 32, 32>}, {transform_indices = @transform_6, window_bounds = array<i64: 1, 32, 32>}, {transform_indices = @transform_7, window_bounds = array<i64: 1, 32, 64>}, {transform_indices = @transform_8, window_bounds = array<i64: 1, 64, 32>}, {transform_indices = @transform_9, window_bounds = array<i64: 1, 9, 32>}, {transform_indices = @transform_10, window_bounds = array<i64: 1, 1, 64>}, {transform_indices = @transform_11, window_bounds = array<i64: 2, 8, 32>}, {transform_indices = @transform_12, window_bounds = array<i64: 2, 4, 8, 8>}]} {
    %c0_i32 = arith.constant 0 : i32
    %0 = arith.cmpi eq, %arg1, %c0_i32 : i32
    %1 = arith.extui %0 : i1 to i32
    %c0_i32_0 = arith.constant 0 : i32
    %2 = arith.cmpi ne, %1, %c0_i32_0 : i32
    scf.if %2 {
      %c0_57 = arith.constant 0 : index
      %c0_58 = arith.constant 0 : index
      %c0_59 = arith.constant 0 : index
      %164 = vector.load %arg2[%c0_57, %c0_58, %c0_59] : memref<2x8x16xf32, #tpu.memory_space<vmem>>, vector<2x8x16xf32>
      %165 = vector.shape_cast %164 : vector<2x8x16xf32> to vector<16x16xf32>
      %166 = arith.truncf %165 : vector<16x16xf32> to vector<16x16xbf16>
      %c0_60 = arith.constant 0 : index
      %c0_61 = arith.constant 0 : index
      %167 = vector.load %arg3[%c0_60, %c0_61] : memref<16x32xbf16, #tpu.memory_space<vmem>>, vector<16x32xbf16>
      %cst_62 = arith.constant dense<0.000000e+00> : vector<16x32xf32>
      %168 = tpu.matmul %166, %167, %cst_62 {dimension_numbers = #tpu.dot_dimension_numbers<[1], [0], [0], [1], [0, 0, 1, 1], [], []>} : vector<16x16xbf16>, vector<16x32xbf16>, vector<16x32xf32> -> vector<16x32xf32>
      %c0_63 = arith.constant 0 : index
      %c0_64 = arith.constant 0 : index
      %169 = vector.load %arg4[%c0_63, %c0_64] : memref<1x32xf32, #tpu.memory_space<vmem>>, vector<1x32xf32>
      %170 = vector.broadcast %169 : vector<1x32xf32> to vector<16x32xf32>
      %171 = arith.addf %168, %170 : vector<16x32xf32>
      %172 = vector.shape_cast %171 : vector<16x32xf32> to vector<2x8x32xf32>
      %c0_65 = arith.constant 0 : index
      %c0_66 = arith.constant 0 : index
      %c0_67 = arith.constant 0 : index
      %173 = vector.load %arg13[%c0_65, %c0_66, %c0_67] : memref<2x8x32xf32, #tpu.memory_space<vmem>>, vector<2x8x32xf32>
      tpu.vector_store %arg13[%c0_65, %c0_66, %c0_67], %172 {strides = array<i32>} : memref<2x8x32xf32, #tpu.memory_space<vmem>>, vector<2x8x32xf32>,
    } else {
    }
    %c0 = arith.constant 0 : index
    %c0_1 = arith.constant 0 : index
    %c0_2 = arith.constant 0 : index
    %3 = vector.load %arg13[%c0, %c0_1, %c0_2] : memref<2x8x32xf32, #tpu.memory_space<vmem>>, vector<2x8x32xf32>
    %4 = vector.shape_cast %3 : vector<2x8x32xf32> to vector<16x32xf32>
    %5 = arith.truncf %4 : vector<16x32xf32> to vector<16x32xbf16>
    %c0_3 = arith.constant 0 : index
    %c0_4 = arith.constant 0 : index
    %c0_5 = arith.constant 0 : index
    %6 = vector.load %arg11[%c0_3, %c0_4, %c0_5] : memref<1x9x32xf32, #tpu.memory_space<vmem>>, vector<1x9x32xf32>
    %7 = vector.shape_cast %6 : vector<1x9x32xf32> to vector<9x32xf32>
    %8 = vector.extract_strided_slice %7 {offsets = [0, 0], sizes = [1, 32], strides = [1, 1]} : vector<9x32xf32> to vector<1x32xf32>
    %9 = vector.extract_strided_slice %7 {offsets = [1, 0], sizes = [1, 32], strides = [1, 1]} : vector<9x32xf32> to vector<1x32xf32>
    %10 = vector.extract_strided_slice %7 {offsets = [2, 0], sizes = [1, 32], strides = [1, 1]} : vector<9x32xf32> to vector<1x32xf32>
    %11 = vector.extract_strided_slice %7 {offsets = [3, 0], sizes = [1, 32], strides = [1, 1]} : vector<9x32xf32> to vector<1x32xf32>
    %12 = vector.extract_strided_slice %7 {offsets = [4, 0], sizes = [1, 32], strides = [1, 1]} : vector<9x32xf32> to vector<1x32xf32>
    %13 = vector.extract_strided_slice %7 {offsets = [5, 0], sizes = [1, 32], strides = [1, 1]} : vector<9x32xf32> to vector<1x32xf32>
    %14 = vector.extract_strided_slice %7 {offsets = [6, 0], sizes = [1, 32], strides = [1, 1]} : vector<9x32xf32> to vector<1x32xf32>
    %15 = vector.extract_strided_slice %7 {offsets = [7, 0], sizes = [1, 32], strides = [1, 1]} : vector<9x32xf32> to vector<1x32xf32>
    %16 = vector.extract_strided_slice %7 {offsets = [8, 0], sizes = [1, 32], strides = [1, 1]} : vector<9x32xf32> to vector<1x32xf32>
    %c0_6 = arith.constant 0 : index
    %c0_7 = arith.constant 0 : index
    %c0_8 = arith.constant 0 : index
    %17 = vector.load %arg12[%c0_6, %c0_7, %c0_8] : memref<1x1x64xf32, #tpu.memory_space<vmem>>, vector<1x1x64xf32>
    %18 = vector.shape_cast %17 : vector<1x1x64xf32> to vector<1x64xf32>
    %c0_9 = arith.constant 0 : index
    %c0_10 = arith.constant 0 : index
    %c0_11 = arith.constant 0 : index
    %19 = vector.load %arg5[%c0_9, %c0_10, %c0_11] : memref<1x32x32xbf16, #tpu.memory_space<vmem>>, vector<1x32x32xbf16>
    %20 = vector.shape_cast %19 : vector<1x32x32xbf16> to vector<32x32xbf16>
    %cst = arith.constant dense<0.000000e+00> : vector<16x32xf32>
    %21 = tpu.matmul %5, %20, %cst {dimension_numbers = #tpu.dot_dimension_numbers<[1], [0], [0], [1], [0, 0, 1, 1], [], []>} : vector<16x32xbf16>, vector<32x32xbf16>, vector<16x32xf32> -> vector<16x32xf32>
    %22 = vector.broadcast %8 : vector<1x32xf32> to vector<16x32xf32>
    %23 = arith.addf %21, %22 : vector<16x32xf32>
    %c0_12 = arith.constant 0 : index
    %c0_13 = arith.constant 0 : index
    %c0_14 = arith.constant 0 : index
    %24 = vector.load %arg6[%c0_12, %c0_13, %c0_14] : memref<1x32x32xbf16, #tpu.memory_space<vmem>>, vector<1x32x32xbf16>
    %25 = vector.shape_cast %24 : vector<1x32x32xbf16> to vector<32x32xbf16>
    %cst_15 = arith.constant dense<0.000000e+00> : vector<16x32xf32>
    %26 = tpu.matmul %5, %25, %cst_15 {dimension_numbers = #tpu.dot_dimension_numbers<[1], [0], [0], [1], [0, 0, 1, 1], [], []>} : vector<16x32xbf16>, vector<32x32xbf16>, vector<16x32xf32> -> vector<16x32xf32>
    %27 = vector.broadcast %9 : vector<1x32xf32> to vector<16x32xf32>
    %28 = arith.addf %26, %27 : vector<16x32xf32>
    %c0_16 = arith.constant 0 : index
    %c0_17 = arith.constant 0 : index
    %c0_18 = arith.constant 0 : index
    %29 = vector.load %arg7[%c0_16, %c0_17, %c0_18] : memref<1x32x32xbf16, #tpu.memory_space<vmem>>, vector<1x32x32xbf16>
    %30 = vector.shape_cast %29 : vector<1x32x32xbf16> to vector<32x32xbf16>
    %cst_19 = arith.constant dense<0.000000e+00> : vector<16x32xf32>
    %31 = tpu.matmul %5, %30, %cst_19 {dimension_numbers = #tpu.dot_dimension_numbers<[1], [0], [0], [1], [0, 0, 1, 1], [], []>} : vector<16x32xbf16>, vector<32x32xbf16>, vector<16x32xf32> -> vector<16x32xf32>
    %32 = vector.broadcast %10 : vector<1x32xf32> to vector<16x32xf32>
    %33 = arith.addf %31, %32 : vector<16x32xf32>
    %34 = vector.extract_strided_slice %23 {offsets = [0, 0], sizes = [8, 32], strides = [1, 1]} : vector<16x32xf32> to vector<8x32xf32>
    %35 = vector.shape_cast %34 : vector<8x32xf32> to vector<8x4x8xf32>
    %36 = tpu.transpose %35, [1, 0, 2] : vector<8x4x8xf32> -> vector<4x8x8xf32>
    %37 = arith.truncf %36 : vector<4x8x8xf32> to vector<4x8x8xbf16>
    %38 = vector.extract_strided_slice %28 {offsets = [0, 0], sizes = [8, 32], strides = [1, 1]} : vector<16x32xf32> to vector<8x32xf32>
    %39 = vector.shape_cast %38 : vector<8x32xf32> to vector<8x4x8xf32>
    %40 = tpu.transpose %39, [1, 0, 2] : vector<8x4x8xf32> -> vector<4x8x8xf32>
    %41 = arith.truncf %40 : vector<4x8x8xf32> to vector<4x8x8xbf16>
    %42 = vector.extract_strided_slice %33 {offsets = [0, 0], sizes = [8, 32], strides = [1, 1]} : vector<16x32xf32> to vector<8x32xf32>
    %43 = vector.shape_cast %42 : vector<8x32xf32> to vector<8x4x8xf32>
    %44 = tpu.transpose %43, [1, 0, 2] : vector<8x4x8xf32> -> vector<4x8x8xf32>
    %45 = arith.truncf %44 : vector<4x8x8xf32> to vector<4x8x8xbf16>
    "tpu.trace_start"() <{level = 10 : i32, message = "hqd,hkd->hqk"}> : () -> ()
    %cst_20 = arith.constant dense<0.000000e+00> : vector<4x8x8xf32>
    %46 = tpu.matmul %37, %41, %cst_20 {dimension_numbers = #tpu.dot_dimension_numbers<[2], [2], [1], [1], [0, 0, 0, 1, 1, 1], [0], [0]>} : vector<4x8x8xbf16>, vector<4x8x8xbf16>, vector<4x8x8xf32> -> vector<4x8x8xf32>
    "tpu.trace_stop"() : () -> ()
    %cst_21 = arith.constant 0.353553385 : f32
    %47 = vector.broadcast %cst_21 : f32 to vector<4x8x8xf32>
    %48 = arith.mulf %46, %47 : vector<4x8x8xf32>
    %cst_22 = arith.constant dense<0xFF800000> : vector<4x8xf32>
    %49 = vector.multi_reduction <maximumf>, %48, %cst_22 [2] : vector<4x8x8xf32> to vector<4x8xf32>
    %50 = vector.shape_cast %49 : vector<4x8xf32> to vector<4x8x1xf32>
    %51 = vector.broadcast %50 : vector<4x8x1xf32> to vector<4x8x8xf32>
    %52 = arith.subf %48, %51 : vector<4x8x8xf32>
    %53 = math.exp %52 : vector<4x8x8xf32>
    %cst_23 = arith.constant dense<0.000000e+00> : vector<4x8xf32>
    %54 = vector.multi_reduction <add>, %53, %cst_23 [2] : vector<4x8x8xf32> to vector<4x8xf32>
    %55 = vector.shape_cast %54 : vector<4x8xf32> to vector<4x8x1xf32>
    %56 = tpu.reciprocal %55 {approx = true} : vector<4x8x1xf32> -> vector<4x8x1xf32>
    %57 = vector.broadcast %56 : vector<4x8x1xf32> to vector<4x8x8xf32>
    %58 = arith.mulf %53, %57 : vector<4x8x8xf32>
    %59 = arith.truncf %58 : vector<4x8x8xf32> to vector<4x8x8xbf16>
    "tpu.trace_start"() <{level = 10 : i32, message = "hqk,hkd->hqd"}> : () -> ()
    %cst_24 = arith.constant dense<0.000000e+00> : vector<4x8x8xf32>
    %60 = tpu.matmul %59, %45, %cst_24 {dimension_numbers = #tpu.dot_dimension_numbers<[2], [1], [1], [2], [0, 0, 0, 1, 1, 2], [0], [0]>} : vector<4x8x8xbf16>, vector<4x8x8xbf16>, vector<4x8x8xf32> -> vector<4x8x8xf32>
    "tpu.trace_stop"() : () -> ()
    %61 = tpu.transpose %60, [1, 0, 2] : vector<4x8x8xf32> -> vector<8x4x8xf32>
    %62 = vector.shape_cast %61 : vector<8x4x8xf32> to vector<8x32xf32>
    %63 = vector.extract_strided_slice %23 {offsets = [8, 0], sizes = [8, 32], strides = [1, 1]} : vector<16x32xf32> to vector<8x32xf32>
    %64 = vector.shape_cast %63 : vector<8x32xf32> to vector<8x4x8xf32>
    %65 = tpu.transpose %64, [1, 0, 2] : vector<8x4x8xf32> -> vector<4x8x8xf32>
    %66 = arith.truncf %65 : vector<4x8x8xf32> to vector<4x8x8xbf16>
    %67 = vector.extract_strided_slice %28 {offsets = [8, 0], sizes = [8, 32], strides = [1, 1]} : vector<16x32xf32> to vector<8x32xf32>
    %68 = vector.shape_cast %67 : vector<8x32xf32> to vector<8x4x8xf32>
    %69 = tpu.transpose %68, [1, 0, 2] : vector<8x4x8xf32> -> vector<4x8x8xf32>
    %70 = arith.truncf %69 : vector<4x8x8xf32> to vector<4x8x8xbf16>
    %71 = vector.extract_strided_slice %33 {offsets = [8, 0], sizes = [8, 32], strides = [1, 1]} : vector<16x32xf32> to vector<8x32xf32>
    %72 = vector.shape_cast %71 : vector<8x32xf32> to vector<8x4x8xf32>
    %73 = tpu.transpose %72, [1, 0, 2] : vector<8x4x8xf32> -> vector<4x8x8xf32>
    %74 = arith.truncf %73 : vector<4x8x8xf32> to vector<4x8x8xbf16>
    "tpu.trace_start"() <{level = 10 : i32, message = "hqd,hkd->hqk"}> : () -> ()
    %cst_25 = arith.constant dense<0.000000e+00> : vector<4x8x8xf32>
    %75 = tpu.matmul %66, %70, %cst_25 {dimension_numbers = #tpu.dot_dimension_numbers<[2], [2], [1], [1], [0, 0, 0, 1, 1, 1], [0], [0]>} : vector<4x8x8xbf16>, vector<4x8x8xbf16>, vector<4x8x8xf32> -> vector<4x8x8xf32>
    "tpu.trace_stop"() : () -> ()
    %cst_26 = arith.constant 0.353553385 : f32
    %76 = vector.broadcast %cst_26 : f32 to vector<4x8x8xf32>
    %77 = arith.mulf %75, %76 : vector<4x8x8xf32>
    %cst_27 = arith.constant dense<0xFF800000> : vector<4x8xf32>
    %78 = vector.multi_reduction <maximumf>, %77, %cst_27 [2] : vector<4x8x8xf32> to vector<4x8xf32>
    %79 = vector.shape_cast %78 : vector<4x8xf32> to vector<4x8x1xf32>
    %80 = vector.broadcast %79 : vector<4x8x1xf32> to vector<4x8x8xf32>
    %81 = arith.subf %77, %80 : vector<4x8x8xf32>
    %82 = math.exp %81 : vector<4x8x8xf32>
    %cst_28 = arith.constant dense<0.000000e+00> : vector<4x8xf32>
    %83 = vector.multi_reduction <add>, %82, %cst_28 [2] : vector<4x8x8xf32> to vector<4x8xf32>
    %84 = vector.shape_cast %83 : vector<4x8xf32> to vector<4x8x1xf32>
    %85 = tpu.reciprocal %84 {approx = true} : vector<4x8x1xf32> -> vector<4x8x1xf32>
    %86 = vector.broadcast %85 : vector<4x8x1xf32> to vector<4x8x8xf32>
    %87 = arith.mulf %82, %86 : vector<4x8x8xf32>
    %88 = arith.truncf %87 : vector<4x8x8xf32> to vector<4x8x8xbf16>
    "tpu.trace_start"() <{level = 10 : i32, message = "hqk,hkd->hqd"}> : () -> ()
    %cst_29 = arith.constant dense<0.000000e+00> : vector<4x8x8xf32>
    %89 = tpu.matmul %88, %74, %cst_29 {dimension_numbers = #tpu.dot_dimension_numbers<[2], [1], [1], [2], [0, 0, 0, 1, 1, 2], [0], [0]>} : vector<4x8x8xbf16>, vector<4x8x8xbf16>, vector<4x8x8xf32> -> vector<4x8x8xf32>
    "tpu.trace_stop"() : () -> ()
    %90 = tpu.transpose %89, [1, 0, 2] : vector<4x8x8xf32> -> vector<8x4x8xf32>
    %91 = vector.shape_cast %90 : vector<8x4x8xf32> to vector<8x32xf32>
    %c1_i32 = arith.constant 1 : i32
    %92 = arith.cmpi eq, %arg1, %c1_i32 : i32
    %93 = arith.extui %92 : i1 to i32
    %c0_i32_30 = arith.constant 0 : i32
    %94 = arith.cmpi ne, %93, %c0_i32_30 : i32
    scf.if %94 {
      %c0_57 = arith.constant 0 : index
      %c0_58 = arith.constant 0 : index
      %c0_59 = arith.constant 0 : index
      %c0_60 = arith.constant 0 : index
      %164 = vector.load %arg14[%c0_57, %c0_58, %c0_59, %c0_60] : memref<2x4x8x8xf32, #tpu.memory_space<vmem>>, vector<1x4x8x8xf32>
      %165 = vector.shape_cast %164 : vector<1x4x8x8xf32> to vector<4x8x8xf32>
      %166 = vector.shape_cast %58 : vector<4x8x8xf32> to vector<1x4x8x8xf32>
      tpu.vector_store %arg14[%c0_57, %c0_58, %c0_59, %c0_60], %166 {strides = array<i32>} : memref<2x4x8x8xf32, #tpu.memory_space<vmem>>, vector<1x4x8x8xf32>,
      %c1 = arith.constant 1 : index
      %c0_61 = arith.constant 0 : index
      %c0_62 = arith.constant 0 : index
      %c0_63 = arith.constant 0 : index
      %167 = vector.load %arg14[%c1, %c0_61, %c0_62, %c0_63] : memref<2x4x8x8xf32, #tpu.memory_space<vmem>>, vector<1x4x8x8xf32>
      %168 = vector.shape_cast %167 : vector<1x4x8x8xf32> to vector<4x8x8xf32>
      %169 = vector.shape_cast %87 : vector<4x8x8xf32> to vector<1x4x8x8xf32>
      tpu.vector_store %arg14[%c1, %c0_61, %c0_62, %c0_63], %169 {strides = array<i32>} : memref<2x4x8x8xf32, #tpu.memory_space<vmem>>, vector<1x4x8x8xf32>,
    } else {
    }
    %95 = tpu.concatenate %62, %91 in 0 : vector<8x32xf32>, vector<8x32xf32> -> vector<16x32xf32>
    %96 = arith.truncf %95 : vector<16x32xf32> to vector<16x32xbf16>
    %c0_31 = arith.constant 0 : index
    %c0_32 = arith.constant 0 : index
    %c0_33 = arith.constant 0 : index
    %97 = vector.load %arg8[%c0_31, %c0_32, %c0_33] : memref<1x32x32xbf16, #tpu.memory_space<vmem>>, vector<1x32x32xbf16>
    %98 = vector.shape_cast %97 : vector<1x32x32xbf16> to vector<32x32xbf16>
    %cst_34 = arith.constant dense<0.000000e+00> : vector<16x32xf32>
    %99 = tpu.matmul %96, %98, %cst_34 {dimension_numbers = #tpu.dot_dimension_numbers<[1], [0], [0], [1], [0, 0, 1, 1], [], []>} : vector<16x32xbf16>, vector<32x32xbf16>, vector<16x32xf32> -> vector<16x32xf32>
    %100 = vector.broadcast %11 : vector<1x32xf32> to vector<16x32xf32>
    %101 = arith.addf %99, %100 : vector<16x32xf32>
    %102 = arith.addf %4, %101 : vector<16x32xf32>
    %cst_35 = arith.constant dense<0.000000e+00> : vector<16xf32>
    %103 = vector.multi_reduction <add>, %102, %cst_35 [1] : vector<16x32xf32> to vector<16xf32>
    %104 = vector.shape_cast %103 : vector<16xf32> to vector<16x1xf32>
    %cst_36 = arith.constant 3.200000e+01 : f32
    %105 = vector.broadcast %cst_36 : f32 to vector<16x1xf32>
    %106 = arith.divf %104, %105 : vector<16x1xf32>
    %107 = vector.broadcast %106 : vector<16x1xf32> to vector<16x32xf32>
    %108 = arith.subf %102, %107 : vector<16x32xf32>
    %109 = arith.mulf %108, %108 : vector<16x32xf32>
    %cst_37 = arith.constant dense<0.000000e+00> : vector<16xf32>
    %110 = vector.multi_reduction <add>, %109, %cst_37 [1] : vector<16x32xf32> to vector<16xf32>
    %111 = vector.shape_cast %110 : vector<16xf32> to vector<16x1xf32>
    %cst_38 = arith.constant 3.100000e+01 : f32
    %112 = vector.broadcast %cst_38 : f32 to vector<16x1xf32>
    %113 = arith.divf %111, %112 : vector<16x1xf32>
    %114 = math.sqrt %113 : vector<16x1xf32>
    %115 = vector.broadcast %106 : vector<16x1xf32> to vector<16x32xf32>
    %116 = arith.subf %102, %115 : vector<16x32xf32>
    %cst_39 = arith.constant 9.99999996E-13 : f32
    %117 = vector.broadcast %cst_39 : f32 to vector<16x1xf32>
    %118 = arith.addf %114, %117 : vector<16x1xf32>
    %119 = vector.broadcast %118 : vector<16x1xf32> to vector<16x32xf32>
    %120 = arith.divf %116, %119 : vector<16x32xf32>
    %121 = vector.broadcast %12 : vector<1x32xf32> to vector<16x32xf32>
    %122 = arith.mulf %121, %120 : vector<16x32xf32>
    %123 = vector.broadcast %13 : vector<1x32xf32> to vector<16x32xf32>
    %124 = arith.addf %122, %123 : vector<16x32xf32>
    %125 = arith.truncf %124 : vector<16x32xf32> to vector<16x32xbf16>
    %c0_40 = arith.constant 0 : index
    %c0_41 = arith.constant 0 : index
    %c0_42 = arith.constant 0 : index
    %126 = vector.load %arg9[%c0_40, %c0_41, %c0_42] : memref<1x32x64xbf16, #tpu.memory_space<vmem>>, vector<1x32x64xbf16>
    %127 = vector.shape_cast %126 : vector<1x32x64xbf16> to vector<32x64xbf16>
    %cst_43 = arith.constant dense<0.000000e+00> : vector<16x64xf32>
    %128 = tpu.matmul %125, %127, %cst_43 {dimension_numbers = #tpu.dot_dimension_numbers<[1], [0], [0], [1], [0, 0, 1, 1], [], []>} : vector<16x32xbf16>, vector<32x64xbf16>, vector<16x64xf32> -> vector<16x64xf32>
    %129 = vector.broadcast %18 : vector<1x64xf32> to vector<16x64xf32>
    %130 = arith.addf %128, %129 : vector<16x64xf32>
    %cst_44 = arith.constant 0.000000e+00 : f32
    %131 = vector.broadcast %cst_44 : f32 to vector<16x64xf32>
    %132 = arith.maximumf %130, %131 : vector<16x64xf32>
    %133 = arith.truncf %132 : vector<16x64xf32> to vector<16x64xbf16>
    %c0_45 = arith.constant 0 : index
    %c0_46 = arith.constant 0 : index
    %c0_47 = arith.constant 0 : index
    %134 = vector.load %arg10[%c0_45, %c0_46, %c0_47] : memref<1x64x32xbf16, #tpu.memory_space<vmem>>, vector<1x64x32xbf16>
    %135 = vector.shape_cast %134 : vector<1x64x32xbf16> to vector<64x32xbf16>
    %cst_48 = arith.constant dense<0.000000e+00> : vector<16x32xf32>
    %136 = tpu.matmul %133, %135, %cst_48 {dimension_numbers = #tpu.dot_dimension_numbers<[1], [0], [0], [1], [0, 0, 1, 1], [], []>} : vector<16x64xbf16>, vector<64x32xbf16>, vector<16x32xf32> -> vector<16x32xf32>
    %137 = vector.broadcast %14 : vector<1x32xf32> to vector<16x32xf32>
    %138 = arith.addf %136, %137 : vector<16x32xf32>
    %139 = arith.addf %124, %138 : vector<16x32xf32>
    %cst_49 = arith.constant dense<0.000000e+00> : vector<16xf32>
    %140 = vector.multi_reduction <add>, %139, %cst_49 [1] : vector<16x32xf32> to vector<16xf32>
    %141 = vector.shape_cast %140 : vector<16xf32> to vector<16x1xf32>
    %cst_50 = arith.constant 3.200000e+01 : f32
    %142 = vector.broadcast %cst_50 : f32 to vector<16x1xf32>
    %143 = arith.divf %141, %142 : vector<16x1xf32>
    %144 = vector.broadcast %143 : vector<16x1xf32> to vector<16x32xf32>
    %145 = arith.subf %139, %144 : vector<16x32xf32>
    %146 = arith.mulf %145, %145 : vector<16x32xf32>
    %cst_51 = arith.constant dense<0.000000e+00> : vector<16xf32>
    %147 = vector.multi_reduction <add>, %146, %cst_51 [1] : vector<16x32xf32> to vector<16xf32>
    %148 = vector.shape_cast %147 : vector<16xf32> to vector<16x1xf32>
    %cst_52 = arith.constant 3.100000e+01 : f32
    %149 = vector.broadcast %cst_52 : f32 to vector<16x1xf32>
    %150 = arith.divf %148, %149 : vector<16x1xf32>
    %151 = math.sqrt %150 : vector<16x1xf32>
    %152 = vector.broadcast %143 : vector<16x1xf32> to vector<16x32xf32>
    %153 = arith.subf %139, %152 : vector<16x32xf32>
    %cst_53 = arith.constant 9.99999996E-13 : f32
    %154 = vector.broadcast %cst_53 : f32 to vector<16x1xf32>
    %155 = arith.addf %151, %154 : vector<16x1xf32>
    %156 = vector.broadcast %155 : vector<16x1xf32> to vector<16x32xf32>
    %157 = arith.divf %153, %156 : vector<16x32xf32>
    %158 = vector.broadcast %15 : vector<1x32xf32> to vector<16x32xf32>
    %159 = arith.mulf %158, %157 : vector<16x32xf32>
    %160 = vector.broadcast %16 : vector<1x32xf32> to vector<16x32xf32>
    %161 = arith.addf %159, %160 : vector<16x32xf32>
    %162 = vector.shape_cast %161 : vector<16x32xf32> to vector<2x8x32xf32>
    %c0_54 = arith.constant 0 : index
    %c0_55 = arith.constant 0 : index
    %c0_56 = arith.constant 0 : index
    %163 = vector.load %arg13[%c0_54, %c0_55, %c0_56] : memref<2x8x32xf32, #tpu.memory_space<vmem>>, vector<2x8x32xf32>
    tpu.vector_store %arg13[%c0_54, %c0_55, %c0_56], %162 {strides = array<i32>} : memref<2x8x32xf32, #tpu.memory_space<vmem>>, vector<2x8x32xf32>,
    return
  }
  func.func @transform_0(%arg0: i32, %arg1: i32) -> (i32, i32, i32) {
    %c0_i32 = arith.constant 0 : i32
    %c0_i32_0 = arith.constant 0 : i32
    %c0_i32_1 = arith.constant 0 : i32
    return %arg0, %c0_i32, %c0_i32_0 : i32, i32, i32
  }
  func.func @transform_1(%arg0: i32, %arg1: i32) -> (i32, i32) {
    %c0_i32 = arith.constant 0 : i32
    %c0_i32_0 = arith.constant 0 : i32
    %c0_i32_1 = arith.constant 0 : i32
    return %c0_i32, %c0_i32_0 : i32, i32
  }
  func.func @transform_2(%arg0: i32, %arg1: i32) -> (i32, i32) {
    %c0_i32 = arith.constant 0 : i32
    %c0_i32_0 = arith.constant 0 : i32
    %c0_i32_1 = arith.constant 0 : i32
    return %c0_i32, %c0_i32_0 : i32, i32
  }
  func.func @transform_3(%arg0: i32, %arg1: i32) -> (i32, i32, i32) {
    %c0_i32 = arith.constant 0 : i32
    %c0_i32_0 = arith.constant 0 : i32
    %c0_i32_1 = arith.constant 0 : i32
    return %arg1, %c0_i32, %c0_i32_0 : i32, i32, i32
  }
  func.func @transform_4(%arg0: i32, %arg1: i32) -> (i32, i32, i32) {
    %c0_i32 = arith.constant 0 : i32
    %c0_i32_0 = arith.constant 0 : i32
    %c0_i32_1 = arith.constant 0 : i32
    return %arg1, %c0_i32, %c0_i32_0 : i32, i32, i32
  }
  func.func @transform_5(%arg0: i32, %arg1: i32) -> (i32, i32, i32) {
    %c0_i32 = arith.constant 0 : i32
    %c0_i32_0 = arith.constant 0 : i32
    %c0_i32_1 = arith.constant 0 : i32
    return %arg1, %c0_i32, %c0_i32_0 : i32, i32, i32
  }
  func.func @transform_6(%arg0: i32, %arg1: i32) -> (i32, i32, i32) {
    %c0_i32 = arith.constant 0 : i32
    %c0_i32_0 = arith.constant 0 : i32
    %c0_i32_1 = arith.constant 0 : i32
    return %arg1, %c0_i32, %c0_i32_0 : i32, i32, i32
  }
  func.func @transform_7(%arg0: i32, %arg1: i32) -> (i32, i32, i32) {
    %c0_i32 = arith.constant 0 : i32
    %c0_i32_0 = arith.constant 0 : i32
    %c0_i32_1 = arith.constant 0 : i32
    return %arg1, %c0_i32, %c0_i32_0 : i32, i32, i32
  }
  func.func @transform_8(%arg0: i32, %arg1: i32) -> (i32, i32, i32) {
    %c0_i32 = arith.constant 0 : i32
    %c0_i32_0 = arith.constant 0 : i32
    %c0_i32_1 = arith.constant 0 : i32
    return %arg1, %c0_i32, %c0_i32_0 : i32, i32, i32
  }
  func.func @transform_9(%arg0: i32, %arg1: i32) -> (i32, i32, i32) {
    %c0_i32 = arith.constant 0 : i32
    %c0_i32_0 = arith.constant 0 : i32
    %c0_i32_1 = arith.constant 0 : i32
    return %arg1, %c0_i32, %c0_i32_0 : i32, i32, i32
  }
  func.func @transform_10(%arg0: i32, %arg1: i32) -> (i32, i32, i32) {
    %c0_i32 = arith.constant 0 : i32
    %c0_i32_0 = arith.constant 0 : i32
    %c0_i32_1 = arith.constant 0 : i32
    return %arg1, %c0_i32, %c0_i32_0 : i32, i32, i32
  }
  func.func @transform_11(%arg0: i32, %arg1: i32) -> (i32, i32, i32) {
    %c0_i32 = arith.constant 0 : i32
    %c0_i32_0 = arith.constant 0 : i32
    %c0_i32_1 = arith.constant 0 : i32
    return %arg0, %c0_i32, %c0_i32_0 : i32, i32, i32
  }
  func.func @transform_12(%arg0: i32, %arg1: i32) -> (i32, i32, i32, i32) {
    %c0_i32 = arith.constant 0 : i32
    %c0_i32_0 = arith.constant 0 : i32
    %c0_i32_1 = arith.constant 0 : i32
    %c0_i32_2 = arith.constant 0 : i32
    return %arg0, %c0_i32, %c0_i32_0, %c0_i32_1 : i32, i32, i32, i32
  }
}

</mosaic_0001>

<llo_original>
// kernel: tpu_custom_call.1
$region0: #{tpu_custom_call.1}
  #allocation0 [shape = 'u32[]', space=smem, size = 0x4, offset = 0x4, fixed_abs, tag = 'smem constant byte address 0x4 - core index']
  #allocation1 [shape = 'u32[72,128]{1,0:T(1,128)}', space=vmem, size = 0x9000, scoped, tag = 'internal scratch']
  %s0 = inlined_call_operand.vmem [shape: f32[2,8,16], index: 0, kind: input, shape index: {}]
  %s1 = inlined_call_operand.vmem [shape: bf16[16,32], index: 1, kind: input, shape index: {}]
  %s2 = inlined_call_operand.vmem [shape: f32[1,32], index: 2, kind: input, shape index: {}]
  %s3 = inlined_call_operand.vmem [shape: bf16[2,32,32], index: 3, kind: input, shape index: {}]
  %s4 = inlined_call_operand.vmem [shape: bf16[2,32,32], index: 4, kind: input, shape index: {}]
  %s5 = inlined_call_operand.vmem [shape: bf16[2,32,32], index: 5, kind: input, shape index: {}]
  %s6 = inlined_call_operand.hbm [shape: bf16[2,32,32], index: 6, kind: input, shape index: {}]
  %s7 = inlined_call_operand.hbm [shape: bf16[2,32,64], index: 7, kind: input, shape index: {}]
  %s8 = inlined_call_operand.vmem [shape: bf16[2,64,32], index: 8, kind: input, shape index: {}]
  %s9 = inlined_call_operand.vmem [shape: f32[2,9,32], index: 9, kind: input, shape index: {}]
  %s10 = inlined_call_operand.vmem [shape: f32[2,1,64], index: 10, kind: input, shape index: {}]
  %s11 = inlined_call_operand.hbm [shape: f32[2,8,32], index: 11, kind: output, shape index: {0}]
  %s12 = inlined_call_operand.hbm [shape: f32[2,4,8,8], index: 12, kind: output, shape index: {1}]
  %13 = xla_tuple %s11, %s12
  %s14 = sld [smem:[#allocation0]]
  $region101: #{tpu_custom_call.1} parent=0
    _
  %s16 = ssub.s32 1, %s14
  %s17 = scalar_select 0, %s16, %s14
  $region1: #{tpu_custom_call.1} parent=0
    #allocation2 [shape = 'u8[16384]{0}', space=vmem, size = 0x4000, scoped, tag = 'input window, operand 6']
    #allocation3 [shape = 's32[2]{0}', space=sflag, size = 0x8, scoped, tag = 'scoped memory for tpu_custom_call.1']
    #allocation4 [shape = 's32[2]{0}', space=sflag, size = 0x8, scoped, tag = 'scoped memory for tpu_custom_call.1']
    #allocation5 [shape = 'u8[16384]{0}', space=vmem, size = 0x4000, scoped, tag = 'input window, operand 7']
    #allocation6 [shape = 's32[2]{0}', space=sflag, size = 0x8, scoped, tag = 'scoped memory for tpu_custom_call.1']
    #allocation7 [shape = 'u8[8192]{0}', space=vmem, size = 0x2000, scoped, tag = 'output window, operand 0, single buffered']
    #allocation8 [shape = 'u8[32768]{0}', space=vmem, size = 0x8000, scoped, tag = 'output window, operand 1, single buffered']
    #allocation9 [shape = 's32[1]{0}', space=sflag, size = 0x4, scoped, tag = 'scoped memory for tpu_custom_call.1']
    %18 = vsyncpa [#allocation3], 0
    %s19 = scalar_lea.sflag [#allocation3], 1
    %20 = vsyncpa %s19, 0
    %21 = vsyncpa [#allocation6], 0
    %s22 = scalar_lea.sflag [#allocation6], 1
    %23 = vsyncpa %s22, 0
    %24 = vsyncpa [#allocation4], 0
    %25 = vsyncpa [#allocation9], 0
    loop: start=0, step=1, limit=4
    $region2: #{tpu_custom_call.1} parent=1 // loop_pre_header
      _
    $region3: #{tpu_custom_call.1} parent=1 // loop_header
      %s27 = sphi 0, %s31
      %p28 = scmp.ge.s32.totalorder %s27, 4
      %s34 = sphi 0, %s46
      %s35 = sphi 0, %s42
      %s36 = sphi 0, %s34
      %s37 = sphi 0, %s35
      %s38 = sphi 0, %s36
      %s39 = sphi 0, %s37
      %s49 = sphi 0, %s51
      %s52 = sphi 0, %s49
      %s53 = sphi 0, %s52
      %s69 = sphi 0, %s53
      %s73 = sphi 0, %s73
      %s75 = sphi 0, %s73
      %s76 = sphi 0, %s75
      %s90 = sphi 0, %s76
      %s94 = sphi 0, %s94
      %s96 = sphi 0, %s94
      %s97 = sphi 0, %s96
      %s111 = sphi 0, %s97
      %s117 = sphi 0, %s119
      %s120 = sphi 0, %s117
      %s121 = sphi 0, %s120
      %s137 = sphi 0, %s121
      %s143 = sphi 0, %s145
      %s146 = sphi 0, %s143
      %s147 = sphi 0, %s146
      %s163 = sphi 0, %s147
      %s169 = sphi 0, %s171
      %s172 = sphi 0, %s169
      %s173 = sphi 0, %s172
      %s189 = sphi 0, %s173
      %s195 = sphi 0, %s197
      %s198 = sphi 0, %s195
      %s199 = sphi 0, %s198
      %s215 = sphi 0, %s199
      %s221 = sphi 0, %s223
      %s224 = sphi 0, %s221
      %s225 = sphi 0, %s224
      %s241 = sphi 0, %s225
      %s247 = sphi 0, %s249
      %s250 = sphi 0, %s247
      %s251 = sphi 0, %s250
      %s267 = sphi 0, %s251
      %s273 = sphi 0, %s275
      %s276 = sphi 0, %s273
      %s277 = sphi 0, %s276
      %s293 = sphi 0, %s277
      %s299 = sphi 0, %s301
      %s302 = sphi 0, %s299
      %s303 = sphi 0, %s302
      %s319 = sphi 0, %s303
      %s325 = sphi 0, %s327
      %s328 = sphi 0, %s325
      %s329 = sphi 0, %s328
      %s345 = sphi 0, %s329
      %s351 = sphi 0, %s353
      %s354 = sphi 0, %s351
      %s355 = sphi 0, %s354
      %s371 = sphi 0, %s355
    $region4: #{tpu_custom_call.1} parent=1 // loop_header_branch
      %30 = sbr.rel (%p28) target = $region8
    $region5: #{tpu_custom_call.1} parent=1 // loop_body
      %s32 = ssub.s32 %s27, 1
      %s33 = ssub.s32 %s27, 2
      %s40 = sadd.s32 1, %s35
      %p41 = scmp.ge.s32.totalorder %s40, 2
      %s42 = scalar_select %p41, 0, %s40
      %s43 = sadd.s32 1, %s34
      %s44 = scalar_select %p41, %s43, %s34
      %p45 = scmp.ge.s32.totalorder %s44, 1
      %s46 = scalar_select %p45, 0, %s44
      %s47 = ssub.s32 %s34, %s46
      %p48 = scmp.eq.s32.totalorder %s47, 0
      %s50 = sadd.s32 %s49, 1
      %s51 = scalar_select %p48, %s49, %s50
      %p54 = pneg %p48
      %p55 = scmp.eq.s32.totalorder %s27, 1
      %p56 = por %p54, %p55
      %p57 = scmp.ne.s32.totalorder %s49, %s52
      %p58 = scmp.eq.s32.totalorder %s27, 0
      %p59 = por %p57, %p58
      %p60 = scmp.ne.s32.totalorder %s49, %s52
      %p61 = scmp.eq.s32.totalorder %s32, 1
      %p62 = por %p60, %p61
      %p63 = scmp.ne.s32.totalorder %s52, %s53
      %p64 = scmp.eq.s32.totalorder %s32, 0
      %p65 = por %p63, %p64
      %p66 = scmp.ne.s32.totalorder %s52, %s53
      %p67 = scmp.eq.s32.totalorder %s33, 1
      %p68 = por %p66, %p67
      %p70 = scmp.ne.s32.totalorder %s53, %s69
      %p71 = scmp.eq.s32.totalorder %s33, 0
      %p72 = por %p70, %p71
      %s74 = sadd.s32 %s73, 1
      %p77 = scmp.eq.s32.totalorder %s27, 1
      %p78 = scmp.ne.s32.totalorder %s73, %s75
      %p79 = scmp.eq.s32.totalorder %s27, 0
      %p80 = por %p78, %p79
      %p81 = scmp.ne.s32.totalorder %s73, %s75
      %p82 = scmp.eq.s32.totalorder %s32, 1
      %p83 = por %p81, %p82
      %p84 = scmp.ne.s32.totalorder %s75, %s76
      %p85 = scmp.eq.s32.totalorder %s32, 0
      %p86 = por %p84, %p85
      %p87 = scmp.ne.s32.totalorder %s75, %s76
      %p88 = scmp.eq.s32.totalorder %s33, 1
      %p89 = por %p87, %p88
      %p91 = scmp.ne.s32.totalorder %s76, %s90
      %p92 = scmp.eq.s32.totalorder %s33, 0
      %p93 = por %p91, %p92
      %s95 = sadd.s32 %s94, 1
      %p98 = scmp.eq.s32.totalorder %s27, 1
      %p99 = scmp.ne.s32.totalorder %s94, %s96
      %p100 = scmp.eq.s32.totalorder %s27, 0
      %p101 = por %p99, %p100
      %p102 = scmp.ne.s32.totalorder %s94, %s96
      %p103 = scmp.eq.s32.totalorder %s32, 1
      %p104 = por %p102, %p103
      %p105 = scmp.ne.s32.totalorder %s96, %s97
      %p106 = scmp.eq.s32.totalorder %s32, 0
      %p107 = por %p105, %p106
      %p108 = scmp.ne.s32.totalorder %s96, %s97
      %p109 = scmp.eq.s32.totalorder %s33, 1
      %p110 = por %p108, %p109
      %p112 = scmp.ne.s32.totalorder %s97, %s111
      %p113 = scmp.eq.s32.totalorder %s33, 0
      %p114 = por %p112, %p113
      %s115 = ssub.s32 %s35, %s42
      %p116 = scmp.eq.s32.totalorder %s115, 0
      %s118 = sadd.s32 %s117, 1
      %s119 = scalar_select %p116, %s117, %s118
      %p122 = pneg %p116
      %p123 = scmp.eq.s32.totalorder %s27, 1
      %p124 = por %p122, %p123
      %p125 = scmp.ne.s32.totalorder %s117, %s120
      %p126 = scmp.eq.s32.totalorder %s27, 0
      %p127 = por %p125, %p126
      %p128 = scmp.ne.s32.totalorder %s117, %s120
      %p129 = scmp.eq.s32.totalorder %s32, 1
      %p130 = por %p128, %p129
      %p131 = scmp.ne.s32.totalorder %s120, %s121
      %p132 = scmp.eq.s32.totalorder %s32, 0
      %p133 = por %p131, %p132
      %p134 = scmp.ne.s32.totalorder %s120, %s121
      %p135 = scmp.eq.s32.totalorder %s33, 1
      %p136 = por %p134, %p135
      %p138 = scmp.ne.s32.totalorder %s121, %s137
      %p139 = scmp.eq.s32.totalorder %s33, 0
      %p140 = por %p138, %p139
      %s141 = ssub.s32 %s35, %s42
      %p142 = scmp.eq.s32.totalorder %s141, 0
      %s144 = sadd.s32 %s143, 1
      %s145 = scalar_select %p142, %s143, %s144
      %p148 = pneg %p142
      %p149 = scmp.eq.s32.totalorder %s27, 1
      %p150 = por %p148, %p149
      %p151 = scmp.ne.s32.totalorder %s143, %s146
      %p152 = scmp.eq.s32.totalorder %s27, 0
      %p153 = por %p151, %p152
      %p154 = scmp.ne.s32.totalorder %s143, %s146
      %p155 = scmp.eq.s32.totalorder %s32, 1
      %p156 = por %p154, %p155
      %p157 = scmp.ne.s32.totalorder %s146, %s147
      %p158 = scmp.eq.s32.totalorder %s32, 0
      %p159 = por %p157, %p158
      %p160 = scmp.ne.s32.totalorder %s146, %s147
      %p161 = scmp.eq.s32.totalorder %s33, 1
      %p162 = por %p160, %p161
      %p164 = scmp.ne.s32.totalorder %s147, %s163
      %p165 = scmp.eq.s32.totalorder %s33, 0
      %p166 = por %p164, %p165
      %s167 = ssub.s32 %s35, %s42
      %p168 = scmp.eq.s32.totalorder %s167, 0
      %s170 = sadd.s32 %s169, 1
      %s171 = scalar_select %p168, %s169, %s170
      %p174 = pneg %p168
      %p175 = scmp.eq.s32.totalorder %s27, 1
      %p176 = por %p174, %p175
      %p177 = scmp.ne.s32.totalorder %s169, %s172
      %p178 = scmp.eq.s32.totalorder %s27, 0
      %p179 = por %p177, %p178
      %p180 = scmp.ne.s32.totalorder %s169, %s172
      %p181 = scmp.eq.s32.totalorder %s32, 1
      %p182 = por %p180, %p181
      %p183 = scmp.ne.s32.totalorder %s172, %s173
      %p184 = scmp.eq.s32.totalorder %s32, 0
      %p185 = por %p183, %p184
      %p186 = scmp.ne.s32.totalorder %s172, %s173
      %p187 = scmp.eq.s32.totalorder %s33, 1
      %p188 = por %p186, %p187
      %p190 = scmp.ne.s32.totalorder %s173, %s189
      %p191 = scmp.eq.s32.totalorder %s33, 0
      %p192 = por %p190, %p191
      %s193 = ssub.s32 %s35, %s42
      %p194 = scmp.eq.s32.totalorder %s193, 0
      %s196 = sadd.s32 %s195, 1
      %s197 = scalar_select %p194, %s195, %s196
      %p200 = pneg %p194
      %p201 = scmp.eq.s32.totalorder %s27, 1
      %p202 = por %p200, %p201
      %p203 = scmp.ne.s32.totalorder %s195, %s198
      %p204 = scmp.eq.s32.totalorder %s27, 0
      %p205 = por %p203, %p204
      %p206 = scmp.ne.s32.totalorder %s195, %s198
      %p207 = scmp.eq.s32.totalorder %s32, 1
      %p208 = por %p206, %p207
      %p209 = scmp.ne.s32.totalorder %s198, %s199
      %p210 = scmp.eq.s32.totalorder %s32, 0
      %p211 = por %p209, %p210
      %p212 = scmp.ne.s32.totalorder %s198, %s199
      %p213 = scmp.eq.s32.totalorder %s33, 1
      %p214 = por %p212, %p213
      %p216 = scmp.ne.s32.totalorder %s199, %s215
      %p217 = scmp.eq.s32.totalorder %s33, 0
      %p218 = por %p216, %p217
      %s219 = ssub.s32 %s35, %s42
      %p220 = scmp.eq.s32.totalorder %s219, 0
      %s222 = sadd.s32 %s221, 1
      %s223 = scalar_select %p220, %s221, %s222
      %p226 = pneg %p220
      %p227 = scmp.eq.s32.totalorder %s27, 1
      %p228 = por %p226, %p227
      %p229 = scmp.ne.s32.totalorder %s221, %s224
      %p230 = scmp.eq.s32.totalorder %s27, 0
      %p231 = por %p229, %p230
      %p232 = scmp.ne.s32.totalorder %s221, %s224
      %p233 = scmp.eq.s32.totalorder %s32, 1
      %p234 = por %p232, %p233
      %p235 = scmp.ne.s32.totalorder %s224, %s225
      %p236 = scmp.eq.s32.totalorder %s32, 0
      %p237 = por %p235, %p236
      %p238 = scmp.ne.s32.totalorder %s224, %s225
      %p239 = scmp.eq.s32.totalorder %s33, 1
      %p240 = por %p238, %p239
      %p242 = scmp.ne.s32.totalorder %s225, %s241
      %p243 = scmp.eq.s32.totalorder %s33, 0
      %p244 = por %p242, %p243
      %s245 = ssub.s32 %s35, %s42
      %p246 = scmp.eq.s32.totalorder %s245, 0
      %s248 = sadd.s32 %s247, 1
      %s249 = scalar_select %p246, %s247, %s248
      %p252 = pneg %p246
      %p253 = scmp.eq.s32.totalorder %s27, 1
      %p254 = por %p252, %p253
      %p255 = scmp.ne.s32.totalorder %s247, %s250
      %p256 = scmp.eq.s32.totalorder %s27, 0
      %p257 = por %p255, %p256
      %p258 = scmp.ne.s32.totalorder %s247, %s250
      %p259 = scmp.eq.s32.totalorder %s32, 1
      %p260 = por %p258, %p259
      %p261 = scmp.ne.s32.totalorder %s250, %s251
      %p262 = scmp.eq.s32.totalorder %s32, 0
      %p263 = por %p261, %p262
      %p264 = scmp.ne.s32.totalorder %s250, %s251
      %p265 = scmp.eq.s32.totalorder %s33, 1
      %p266 = por %p264, %p265
      %p268 = scmp.ne.s32.totalorder %s251, %s267
      %p269 = scmp.eq.s32.totalorder %s33, 0
      %p270 = por %p268, %p269
      %s271 = ssub.s32 %s35, %s42
      %p272 = scmp.eq.s32.totalorder %s271, 0
      %s274 = sadd.s32 %s273, 1
      %s275 = scalar_select %p272, %s273, %s274
      %p278 = pneg %p272
      %p279 = scmp.eq.s32.totalorder %s27, 1
      %p280 = por %p278, %p279
      %p281 = scmp.ne.s32.totalorder %s273, %s276
      %p282 = scmp.eq.s32.totalorder %s27, 0
      %p283 = por %p281, %p282
      %p284 = scmp.ne.s32.totalorder %s273, %s276
      %p285 = scmp.eq.s32.totalorder %s32, 1
      %p286 = por %p284, %p285
      %p287 = scmp.ne.s32.totalorder %s276, %s277
      %p288 = scmp.eq.s32.totalorder %s32, 0
      %p289 = por %p287, %p288
      %p290 = scmp.ne.s32.totalorder %s276, %s277
      %p291 = scmp.eq.s32.totalorder %s33, 1
      %p292 = por %p290, %p291
      %p294 = scmp.ne.s32.totalorder %s277, %s293
      %p295 = scmp.eq.s32.totalorder %s33, 0
      %p296 = por %p294, %p295
      %s297 = ssub.s32 %s35, %s42
      %p298 = scmp.eq.s32.totalorder %s297, 0
      %s300 = sadd.s32 %s299, 1
      %s301 = scalar_select %p298, %s299, %s300
      %p304 = pneg %p298
      %p305 = scmp.eq.s32.totalorder %s27, 1
      %p306 = por %p304, %p305
      %p307 = scmp.ne.s32.totalorder %s299, %s302
      %p308 = scmp.eq.s32.totalorder %s27, 0
      %p309 = por %p307, %p308
      %p310 = scmp.ne.s32.totalorder %s299, %s302
      %p311 = scmp.eq.s32.totalorder %s32, 1
      %p312 = por %p310, %p311
      %p313 = scmp.ne.s32.totalorder %s302, %s303
      %p314 = scmp.eq.s32.totalorder %s32, 0
      %p315 = por %p313, %p314
      %p316 = scmp.ne.s32.totalorder %s302, %s303
      %p317 = scmp.eq.s32.totalorder %s33, 1
      %p318 = por %p316, %p317
      %p320 = scmp.ne.s32.totalorder %s303, %s319
      %p321 = scmp.eq.s32.totalorder %s33, 0
      %p322 = por %p320, %p321
      %s323 = ssub.s32 %s34, %s46
      %p324 = scmp.eq.s32.totalorder %s323, 0
      %s326 = sadd.s32 %s325, 1
      %s327 = scalar_select %p324, %s325, %s326
      %p330 = pneg %p324
      %p331 = scmp.eq.s32.totalorder %s27, 1
      %p332 = por %p330, %p331
      %p333 = scmp.ne.s32.totalorder %s325, %s328
      %p334 = scmp.eq.s32.totalorder %s27, 0
      %p335 = por %p333, %p334
      %p336 = scmp.ne.s32.totalorder %s325, %s328
      %p337 = scmp.eq.s32.totalorder %s32, 1
      %p338 = por %p336, %p337
      %p339 = scmp.ne.s32.totalorder %s328, %s329
      %p340 = scmp.eq.s32.totalorder %s32, 0
      %p341 = por %p339, %p340
      %p342 = scmp.ne.s32.totalorder %s328, %s329
      %p343 = scmp.eq.s32.totalorder %s33, 1
      %p344 = por %p342, %p343
      %p346 = scmp.ne.s32.totalorder %s329, %s345
      %p347 = scmp.eq.s32.totalorder %s33, 0
      %p348 = por %p346, %p347
      %s349 = ssub.s32 %s34, %s46
      %p350 = scmp.eq.s32.totalorder %s349, 0
      %s352 = sadd.s32 %s351, 1
      %s353 = scalar_select %p350, %s351, %s352
      %p356 = pneg %p350
      %p357 = scmp.eq.s32.totalorder %s27, 1
      %p358 = por %p356, %p357
      %p359 = scmp.ne.s32.totalorder %s351, %s354
      %p360 = scmp.eq.s32.totalorder %s27, 0
      %p361 = por %p359, %p360
      %p362 = scmp.ne.s32.totalorder %s351, %s354
      %p363 = scmp.eq.s32.totalorder %s32, 1
      %p364 = por %p362, %p363
      %p365 = scmp.ne.s32.totalorder %s354, %s355
      %p366 = scmp.eq.s32.totalorder %s32, 0
      %p367 = por %p365, %p366
      %p368 = scmp.ne.s32.totalorder %s354, %s355
      %p369 = scmp.eq.s32.totalorder %s33, 1
      %p370 = por %p368, %p369
      %p372 = scmp.ne.s32.totalorder %s355, %s371
      %p373 = scmp.eq.s32.totalorder %s33, 0
      %p374 = por %p372, %p373
      %p375 = scmp.le.s32.totalorder 1, %s27
      %p376 = scmp.lt.s32.totalorder %s27, 3
      %p377 = pnand %p375, %p376
      %p378 = pneg %p377
      // Predicated region
      $region9: #{tpu_custom_call.1} parent=5 // pred_check
        _
      $region10: #{tpu_custom_call.1} parent=5 // pred_check_branch
        %380 = sbr.rel (%p377) target = $region12
      $region11: #{tpu_custom_call.1} parent=5 // pred_region
        %s381 = ssub.s32 %s27, 1
        // Predicated region
        $region13: #{tpu_custom_call.1} parent=11 // pred_check
          %p382 = pneg %p65
        $region14: #{tpu_custom_call.1} parent=11 // pred_check_branch
          %384 = sbr.rel (%p382) target = $region16
        $region15: #{tpu_custom_call.1} parent=11 // pred_region
          %s385 = smul.u32 2, %s36
          %p386 = scmp.lt.s32.totalorder %s385, 1
          %s387 = scalar_select %p386, %s385, 1
          %s388 = smul.addr %s387, 8
          %s389 = scalar_lea.vmem %s0, %s388
          %s390 = smul.u32 2, %s36
        $region16: #{tpu_custom_call.1} parent=11 // pred_fallthru
          _
        // Predicated region
        $region17: #{tpu_custom_call.1} parent=11 // pred_check
          %p391 = pneg %p86
        $region18: #{tpu_custom_call.1} parent=11 // pred_check_branch
          %393 = sbr.rel (%p391) target = $region20
        $region19: #{tpu_custom_call.1} parent=11 // pred_region
          _
        $region20: #{tpu_custom_call.1} parent=11 // pred_fallthru
          _
        // Predicated region
        $region21: #{tpu_custom_call.1} parent=11 // pred_check
          %p394 = pneg %p107
        $region22: #{tpu_custom_call.1} parent=11 // pred_check_branch
          %396 = sbr.rel (%p394) target = $region24
        $region23: #{tpu_custom_call.1} parent=11 // pred_region
          _
        $region24: #{tpu_custom_call.1} parent=11 // pred_fallthru
          _
      $region12: #{tpu_custom_call.1} parent=5 // pred_fallthru
        _
      %p397 = scmp.lt.s32.totalorder %s27, 2
      // Predicated region
      $region25: #{tpu_custom_call.1} parent=5 // pred_check
        %p398 = pneg %p397
      $region26: #{tpu_custom_call.1} parent=5 // pred_check_branch
        %400 = sbr.rel (%p398) target = $region28
      $region27: #{tpu_custom_call.1} parent=5 // pred_region
        // Predicated region
        $region29: #{tpu_custom_call.1} parent=27 // pred_check
          %p401 = pneg %p127
        $region30: #{tpu_custom_call.1} parent=27 // pred_check_branch
          %403 = sbr.rel (%p401) target = $region32
        $region31: #{tpu_custom_call.1} parent=27 // pred_region
          %p404 = scmp.lt.s32.totalorder %s35, 1
          %s405 = scalar_select %p404, %s35, 1
          %s406 = smul.addr %s405, 4
          %s407 = smul.addr %s406, 4
          %s408 = scalar_lea.vmem %s3, %s407
        $region32: #{tpu_custom_call.1} parent=27 // pred_fallthru
          _
        // Predicated region
        $region33: #{tpu_custom_call.1} parent=27 // pred_check
          %p409 = pneg %p153
        $region34: #{tpu_custom_call.1} parent=27 // pred_check_branch
          %411 = sbr.rel (%p409) target = $region36
        $region35: #{tpu_custom_call.1} parent=27 // pred_region
          %p412 = scmp.lt.s32.totalorder %s35, 1
          %s413 = scalar_select %p412, %s35, 1
          %s414 = smul.addr %s413, 4
          %s415 = smul.addr %s414, 4
          %s416 = scalar_lea.vmem %s4, %s415
        $region36: #{tpu_custom_call.1} parent=27 // pred_fallthru
          _
        // Predicated region
        $region37: #{tpu_custom_call.1} parent=27 // pred_check
          %p417 = pneg %p179
        $region38: #{tpu_custom_call.1} parent=27 // pred_check_branch
          %419 = sbr.rel (%p417) target = $region40
        $region39: #{tpu_custom_call.1} parent=27 // pred_region
          %p420 = scmp.lt.s32.totalorder %s35, 1
          %s421 = scalar_select %p420, %s35, 1
          %s422 = smul.addr %s421, 4
          %s423 = smul.addr %s422, 4
          %s424 = scalar_lea.vmem %s5, %s423
        $region40: #{tpu_custom_call.1} parent=27 // pred_fallthru
          _
        // Predicated region
        $region41: #{tpu_custom_call.1} parent=27 // pred_check
          %p425 = pneg %p205
        $region42: #{tpu_custom_call.1} parent=27 // pred_check_branch
          %427 = sbr.rel (%p425) target = $region44
        $region43: #{tpu_custom_call.1} parent=27 // pred_region
          %s428 = sand.u32 %s195, 1
          %s429 = scalar_lea.sflag [#allocation3], %s428
          %s430 = sand.u32 %s195, 1
          %s431 = smul.addr %s430, 16
          %s432 = scalar_lea.vmem [#allocation2], %s431
          %434 = vsyncadd %s429, 0
          %s435 = smul.addr %s35, 4
          %s436 = smul.addr %s435, 4
          %s437 = scalar_lea.hbm %s6, %s436
          %s438 = sshll.u32 %s437, 4
          %s439 = int_to_ptr.hbm [resolvable:$true] %s438
          %s440 = sshll.u32 %s432, 4
          %s441 = int_to_ptr.vmem [resolvable:$true] %s440
          %446 = dma.hbm_to_vmem [thread:$0]  %s439, 256, %s441, %s429, 64, 64, 4
        $region44: #{tpu_custom_call.1} parent=27 // pred_fallthru
          _
        // Predicated region
        $region45: #{tpu_custom_call.1} parent=27 // pred_check
          %p447 = pneg %p231
        $region46: #{tpu_custom_call.1} parent=27 // pred_check_branch
          %449 = sbr.rel (%p447) target = $region48
        $region47: #{tpu_custom_call.1} parent=27 // pred_region
          %s450 = sand.u32 %s221, 1
          %s451 = scalar_lea.sflag [#allocation6], %s450
          %s452 = sand.u32 %s221, 1
          %s453 = smul.addr %s452, 16
          %s454 = scalar_lea.vmem [#allocation5], %s453
          %456 = vsyncadd %s451, 0
          %s457 = smul.addr %s35, 4
          %s458 = smul.addr %s457, 4
          %s459 = scalar_lea.hbm %s7, %s458
          %s460 = sshll.u32 %s459, 4
          %s461 = int_to_ptr.hbm [resolvable:$true] %s460
          %s462 = sshll.u32 %s454, 4
          %s463 = int_to_ptr.vmem [resolvable:$true] %s462
          %468 = dma.hbm_to_vmem [thread:$0]  %s461, 256, %s463, %s451, 64, 64, 4
        $region48: #{tpu_custom_call.1} parent=27 // pred_fallthru
          _
        // Predicated region
        $region49: #{tpu_custom_call.1} parent=27 // pred_check
          %p469 = pneg %p257
        $region50: #{tpu_custom_call.1} parent=27 // pred_check_branch
          %471 = sbr.rel (%p469) target = $region52
        $region51: #{tpu_custom_call.1} parent=27 // pred_region
          %p472 = scmp.lt.s32.totalorder %s35, 1
          %s473 = scalar_select %p472, %s35, 1
          %s474 = smul.addr %s473, 8
          %s475 = smul.addr %s474, 4
          %s476 = scalar_lea.vmem %s8, %s475
        $region52: #{tpu_custom_call.1} parent=27 // pred_fallthru
          _
        // Predicated region
        $region53: #{tpu_custom_call.1} parent=27 // pred_check
          %p477 = pneg %p283
        $region54: #{tpu_custom_call.1} parent=27 // pred_check_branch
          %479 = sbr.rel (%p477) target = $region56
        $region55: #{tpu_custom_call.1} parent=27 // pred_region
          %p480 = scmp.lt.s32.totalorder %s35, 1
          %s481 = scalar_select %p480, %s35, 1
          %s482 = smul.addr %s481, 2
          %s483 = smul.addr %s482, 8
          %s484 = scalar_lea.vmem %s9, %s483
        $region56: #{tpu_custom_call.1} parent=27 // pred_fallthru
          _
        // Predicated region
        $region57: #{tpu_custom_call.1} parent=27 // pred_check
          %p485 = pneg %p309
        $region58: #{tpu_custom_call.1} parent=27 // pred_check_branch
          %487 = sbr.rel (%p485) target = $region60
        $region59: #{tpu_custom_call.1} parent=27 // pred_region
          %p488 = scmp.lt.s32.totalorder %s35, 1
          %s489 = scalar_select %p488, %s35, 1
          %s490 = scalar_lea.vmem %s10, %s489
        $region60: #{tpu_custom_call.1} parent=27 // pred_fallthru
          _
      $region28: #{tpu_custom_call.1} parent=5 // pred_fallthru
        _
      %p491 = scmp.le.s32.totalorder 1, %s27
      %p492 = scmp.lt.s32.totalorder %s27, 3
      %p493 = pnand %p491, %p492
      %p494 = pneg %p493
      // Predicated region
      $region61: #{tpu_custom_call.1} parent=5 // pred_check
        _
      $region62: #{tpu_custom_call.1} parent=5 // pred_check_branch
        %496 = sbr.rel (%p493) target = $region64
      $region63: #{tpu_custom_call.1} parent=5 // pred_region
        %s497 = ssub.s32 %s27, 1
        %s498 = sand.u32 %s198, 1
        %s499 = scalar_lea.sflag [#allocation3], %s498
        %s500 = sand.u32 %s198, 1
        %s501 = smul.addr %s500, 16
        %s502 = scalar_lea.vmem [#allocation2], %s501
        // Predicated region
        $region65: #{tpu_custom_call.1} parent=63 // pred_check
          %p503 = pneg %p211
        $region66: #{tpu_custom_call.1} parent=63 // pred_check_branch
          %505 = sbr.rel (%p503) target = $region68
        $region67: #{tpu_custom_call.1} parent=63 // pred_region
          %507 = dma.done %s499, 256
        $region68: #{tpu_custom_call.1} parent=63 // pred_fallthru
          _
        %s508 = sand.u32 %s224, 1
        %s509 = scalar_lea.sflag [#allocation6], %s508
        %s510 = sand.u32 %s224, 1
        %s511 = smul.addr %s510, 16
        %s512 = scalar_lea.vmem [#allocation5], %s511
        // Predicated region
        $region69: #{tpu_custom_call.1} parent=63 // pred_check
          %p513 = pneg %p237
        $region70: #{tpu_custom_call.1} parent=63 // pred_check_branch
          %515 = sbr.rel (%p513) target = $region72
        $region71: #{tpu_custom_call.1} parent=63 // pred_region
          %517 = dma.done %s509, 256
        $region72: #{tpu_custom_call.1} parent=63 // pred_fallthru
          _
        %s518 = smul.u32 2, %s36
        %p519 = scmp.lt.s32.totalorder %s518, 1
        %s520 = scalar_select %p519, %s518, 1
        %s521 = smul.addr %s520, 8
        %s522 = scalar_lea.vmem %s0, %s521
        %p523 = pneg %p65
        %p524 = pneg %p62
        %p525 = pneg %p86
        %p526 = pneg %p83
        %p527 = pneg %p107
        %p528 = pneg %p104
        %p529 = scmp.lt.s32.totalorder %s37, 1
        %s530 = scalar_select %p529, %s37, 1
        %s531 = smul.addr %s530, 4
        %s532 = smul.addr %s531, 4
        %s533 = scalar_lea.vmem %s3, %s532
        %p534 = pneg %p133
        %p535 = pneg %p130
        %p536 = scmp.lt.s32.totalorder %s37, 1
        %s537 = scalar_select %p536, %s37, 1
        %s538 = smul.addr %s537, 4
        %s539 = smul.addr %s538, 4
        %s540 = scalar_lea.vmem %s4, %s539
        %p541 = pneg %p159
        %p542 = pneg %p156
        %p543 = scmp.lt.s32.totalorder %s37, 1
        %s544 = scalar_select %p543, %s37, 1
        %s545 = smul.addr %s544, 4
        %s546 = smul.addr %s545, 4
        %s547 = scalar_lea.vmem %s5, %s546
        %p548 = pneg %p185
        %p549 = pneg %p182
        %s550 = sand.u32 %s198, 1
        %s551 = scalar_lea.sflag [#allocation3], %s550
        %s552 = sand.u32 %s198, 1
        %s553 = smul.addr %s552, 16
        %s554 = scalar_lea.vmem [#allocation2], %s553
        %p555 = pneg %p211
        %p556 = pneg %p208
        %s557 = sand.u32 %s224, 1
        %s558 = scalar_lea.sflag [#allocation6], %s557
        %s559 = sand.u32 %s224, 1
        %s560 = smul.addr %s559, 16
        %s561 = scalar_lea.vmem [#allocation5], %s560
        %p562 = pneg %p237
        %p563 = pneg %p234
        %p564 = scmp.lt.s32.totalorder %s37, 1
        %s565 = scalar_select %p564, %s37, 1
        %s566 = smul.addr %s565, 8
        %s567 = smul.addr %s566, 4
        %s568 = scalar_lea.vmem %s8, %s567
        %p569 = pneg %p263
        %p570 = pneg %p260
        %p571 = scmp.lt.s32.totalorder %s37, 1
        %s572 = scalar_select %p571, %s37, 1
        %s573 = smul.addr %s572, 2
        %s574 = smul.addr %s573, 8
        %s575 = scalar_lea.vmem %s9, %s574
        %p576 = pneg %p289
        %p577 = pneg %p286
        %p578 = scmp.lt.s32.totalorder %s37, 1
        %s579 = scalar_select %p578, %s37, 1
        %s580 = scalar_lea.vmem %s10, %s579
        %p581 = pneg %p315
        %p582 = pneg %p312
        %p583 = pneg %p341
        %p584 = pneg %p338
        %p585 = pneg %p367
        %p586 = pneg %p364
        %s587 = smul.u32 2, %s36
        %p588 = scmp.lt.s32.totalorder %s587, 1
        %s589 = scalar_select %p588, %s587, 1
        %s590 = smul.addr %s589, 8
        %s591 = scalar_lea.vmem %s0, %s590
        %s592 = smul.u32 2, %s36
        %p593 = scmp.lt.s32.totalorder %s37, 1
        %s594 = scalar_select %p593, %s37, 1
        %s595 = smul.addr %s594, 4
        %s596 = smul.addr %s595, 4
        %s597 = scalar_lea.vmem %s3, %s596
        %p598 = scmp.lt.s32.totalorder %s37, 1
        %s599 = scalar_select %p598, %s37, 1
        %s600 = smul.addr %s599, 4
        %s601 = smul.addr %s600, 4
        %s602 = scalar_lea.vmem %s4, %s601
        %p603 = scmp.lt.s32.totalorder %s37, 1
        %s604 = scalar_select %p603, %s37, 1
        %s605 = smul.addr %s604, 4
        %s606 = smul.addr %s605, 4
        %s607 = scalar_lea.vmem %s5, %s606
        %p608 = scmp.lt.s32.totalorder %s37, 1
        %s609 = scalar_select %p608, %s37, 1
        %s610 = smul.addr %s609, 8
        %s611 = smul.addr %s610, 4
        %s612 = scalar_lea.vmem %s8, %s611
        %p613 = scmp.lt.s32.totalorder %s37, 1
        %s614 = scalar_select %p613, %s37, 1
        %s615 = smul.addr %s614, 2
        %s616 = smul.addr %s615, 8
        %s617 = scalar_lea.vmem %s9, %s616
        %p618 = scmp.lt.s32.totalorder %s37, 1
        %s619 = scalar_select %p618, %s37, 1
        %s620 = scalar_lea.vmem %s10, %s619
        %s621 = smul.u32 2, %s36
        %s622 = smul.u32 2, %s36
        %p624 = scmp.eq.s32.totalorder %s37, 0
        // Predicated region
        $region73: #{tpu_custom_call.1} parent=63 // pred_check
          %p625 = pneg %p624
        $region74: #{tpu_custom_call.1} parent=63 // pred_check_branch
          %627 = sbr.rel (%p625) target = $region76
        $region75: #{tpu_custom_call.1} parent=63 // pred_region
          %v628 = vld [vmem:[%s591] sm:$0xff]
          %v629 = vld [vmem:[%s591 + $0x8] sm:$0xff]
          %v630 = vpack.c.bf16 %v629, %v628
          %v631 = vld [vmem:[%s1] sm:$0xf]
          %v632 = vld [vmem:[%s1 + $0x4] sm:$0xf]
          %v633 = vld [vmem:[%s2] sm:$0x1]
          %v635 = vperm.slane %v633, 0
          %v639 = vunpack.c.l.b16 %v631
          %v640 = vunpack.c.l.b16 %v632
          %v641 = vpack.c.b16 %v640, %v639
          %vm643 = vcmask 130048
          %v645 = vsel %vm643, %v630, 0
          %647 = vmatpush.bf16.msra.mxu0 0
          %648 = vmatpush.bf16.msra.mxu0 0
          %649 = vmatpush.bf16.msra.mxu0 0
          %650 = vmatpush.bf16.msra.mxu0 0
          %651 = vmatpush.bf16.msra.mxu0 0
          %652 = vmatpush.bf16.msra.mxu0 0
          %653 = vmatpush.bf16.msra.mxu0 0
          %654 = vmatpush.bf16.msra.mxu0 %v641
          %655 = vmatmul.bf16.gmra.mxu0 %v645
          %v656 = vpop.f32.mrf.mxu0
          %v657 = vadd.f32 %v635, %v656
          %v658 = vpop.f32.mrf.mxu0
          %v659 = vadd.f32 %v635, %v658
          %660 = vdwg.mxu0
          %vm661 = vcmask 261120
          %662 = vst.msk [vmem:[#allocation7] sm:$0xff] %vm661, %v657
          %663 = vst.msk [vmem:[#allocation7 + $0x8] sm:$0xff] %vm661, %v659
        $region76: #{tpu_custom_call.1} parent=63 // pred_fallthru
          _
        %v664 = vld [vmem:[#allocation7] sm:$0xff]
        %v665 = vld [vmem:[#allocation7 + $0x8] sm:$0xff]
        %v666 = vpack.c.bf16 %v665, %v664
        %v667 = vld [vmem:[%s617] sm:$0xff]
        %v668 = vld [vmem:[%s617 + $0x8] sm:$0x1]
        %v669 = vld [vmem:[%s620] sm:$0x1]
        %v670 = vld [vmem:[%s597] sm:$0xf]
        %v671 = vld [vmem:[%s597 + $0x4] sm:$0xf]
        %v672 = vld [vmem:[%s597 + $0x8] sm:$0xf]
        %v673 = vld [vmem:[%s597 + $0xc] sm:$0xf]
        %v674 = vperm.slane %v667, 0
        %v679 = vunpack.c.l.b16 %v670
        %v680 = vunpack.c.l.b16 %v671
        %v681 = vunpack.c.l.b16 %v672
        %v682 = vunpack.c.l.b16 %v673
        %v683 = vpack.c.b16 %v680, %v679
        %v684 = vpack.c.b16 %v682, %v681
        %vm687 = vcmask 261120
        %v689 = vsel %vm687, %v666, 0
        %691 = vmatpush.bf16.msra.mxu0 0
        %692 = vmatpush.bf16.msra.mxu0 0
        %693 = vmatpush.bf16.msra.mxu0 0
        %694 = vmatpush.bf16.msra.mxu0 0
        %695 = vmatpush.bf16.msra.mxu0 0
        %696 = vmatpush.bf16.msra.mxu0 0
        %697 = vmatpush.bf16.msra.mxu0 %v684
        %698 = vmatpush.bf16.msra.mxu0 %v683
        %699 = vmatmul.bf16.gmra.mxu0 %v689
        %v700 = vpop.f32.mrf.mxu0
        %v701 = vadd.f32 %v674, %v700
        %v702 = vpop.f32.mrf.mxu0
        %v703 = vadd.f32 %v674, %v702
        %704 = vdwg.mxu0
        %v705 = vld [vmem:[%s602] sm:$0xf]
        %v706 = vld [vmem:[%s602 + $0x4] sm:$0xf]
        %v707 = vld [vmem:[%s602 + $0x8] sm:$0xf]
        %v708 = vld [vmem:[%s602 + $0xc] sm:$0xf]
        %v709 = vperm.slane %v667, 1
        %v714 = vunpack.c.l.b16 %v705
        %v715 = vunpack.c.l.b16 %v706
        %v716 = vunpack.c.l.b16 %v707
        %v717 = vunpack.c.l.b16 %v708
        %v718 = vpack.c.b16 %v715, %v714
        %v719 = vpack.c.b16 %v717, %v716
        %722 = vmatpush.bf16.msra.mxu0 0
        %723 = vmatpush.bf16.msra.mxu0 0
        %724 = vmatpush.bf16.msra.mxu0 0
        %725 = vmatpush.bf16.msra.mxu0 0
        %726 = vmatpush.bf16.msra.mxu0 0
        %727 = vmatpush.bf16.msra.mxu0 0
        %728 = vmatpush.bf16.msra.mxu0 %v719
        %729 = vmatpush.bf16.msra.mxu0 %v718
        %730 = vmatmul.bf16.gmra.mxu0 %v689
        %v731 = vpop.f32.mrf.mxu0
        %v732 = vadd.f32 %v709, %v731
        %v733 = vpop.f32.mrf.mxu0
        %v734 = vadd.f32 %v709, %v733
        %735 = vdwg.mxu0
        %v736 = vld [vmem:[%s607] sm:$0xf]
        %v737 = vld [vmem:[%s607 + $0x4] sm:$0xf]
        %v738 = vld [vmem:[%s607 + $0x8] sm:$0xf]
        %v739 = vld [vmem:[%s607 + $0xc] sm:$0xf]
        %v740 = vperm.slane %v667, 2
        %v745 = vunpack.c.l.b16 %v736
        %v746 = vunpack.c.l.b16 %v737
        %v747 = vunpack.c.l.b16 %v738
        %v748 = vunpack.c.l.b16 %v739
        %v749 = vpack.c.b16 %v746, %v745
        %v750 = vpack.c.b16 %v748, %v747
        %753 = vmatpush.bf16.msra.mxu0 0
        %754 = vmatpush.bf16.msra.mxu0 0
        %755 = vmatpush.bf16.msra.mxu0 0
        %756 = vmatpush.bf16.msra.mxu0 0
        %757 = vmatpush.bf16.msra.mxu0 0
        %758 = vmatpush.bf16.msra.mxu0 0
        %759 = vmatpush.bf16.msra.mxu0 %v750
        %760 = vmatpush.bf16.msra.mxu0 %v749
        %761 = vmatmul.bf16.gmra.mxu0 %v689
        %v762 = vpop.f32.mrf.mxu0
        %v763 = vadd.f32 %v740, %v762
        %v764 = vpop.f32.mrf.mxu0
        %v765 = vadd.f32 %v740, %v764
        %766 = vdwg.mxu0
        %768 = vrot.lane.b32.xlu0 %v701, 120
        %v769 = vpop.permute.xlu0 %768
        %771 = vrot.lane.b32.xlu0 %v701, 112
        %v772 = vpop.permute.xlu0 %771
        %774 = vrot.lane.b32.xlu0 %v701, 104
        %v775 = vpop.permute.xlu0 %774
        %v777 = vrot.slane %v772, 4
        %vm778 = vcmask 1047556
        %v779 = vsel %vm778, %v777, %v701
        %v780 = vrot.slane %v701, 4
        %v781 = vsel %vm778, %v772, %v780
        %v783 = vunpack.c.l.s4 1983009808
        %v784 = vunpack.c.0.s8 %v783
        %v785 = vperm.slane %v779, %v784
        %v787 = vunpack.c.l.s4 1983009808
        %v788 = vunpack.c.0.s8 %v787
        %v789 = vperm.slane %v781, %v788
        %v790 = vrot.slane %v775, 4
        %v791 = vsel %vm778, %v790, %v769
        %v792 = vrot.slane %v769, 4
        %v793 = vsel %vm778, %v775, %v792
        %v795 = vunpack.c.l.s4 1983009808
        %v796 = vunpack.c.0.s8 %v795
        %v797 = vperm.slane %v791, %v796
        %v799 = vunpack.c.l.s4 1983009808
        %v800 = vunpack.c.0.s8 %v799
        %v801 = vperm.slane %v793, %v800
        %v802 = vrot.slane %v797, 4
        %v803 = vsel %vm778, %v802, %v785
        %v804 = vrot.slane %v785, 4
        %v805 = vsel %vm778, %v797, %v804
        %v807 = vunpack.c.l.s4 1934713408
        %v808 = vunpack.c.0.s8 %v807
        %v809 = vperm.slane %v803, %v808
        %v811 = vunpack.c.l.s4 1934713408
        %v812 = vunpack.c.0.s8 %v811
        %v813 = vperm.slane %v805, %v812
        %v814 = vrot.slane %v801, 4
        %v815 = vsel %vm778, %v814, %v789
        %v816 = vrot.slane %v789, 4
        %v817 = vsel %vm778, %v801, %v816
        %v819 = vunpack.c.l.s4 1934713408
        %v820 = vunpack.c.0.s8 %v819
        %v821 = vperm.slane %v815, %v820
        %v823 = vunpack.c.l.s4 1934713408
        %v824 = vunpack.c.0.s8 %v823
        %v825 = vperm.slane %v817, %v824
        %v826 = vrot.slane %v809, 4
        %v827 = vsel %vm778, 0.0, %v826
        %v828 = vrot.slane %v813, 4
        %v829 = vsel %vm778, 0.0, %v828
        %v830 = vrot.slane %v821, 4
        %v831 = vsel %vm778, 0.0, %v830
        %v832 = vrot.slane %v825, 4
        %v833 = vsel %vm778, 0.0, %v832
        %v834 = vsel %vm778, %v828, %v809
        %v836 = vunpack.c.l.s4 1983009808
        %v837 = vunpack.c.0.s8 %v836
        %v838 = vperm.slane %v834, %v837
        %v839 = vrot.slane %v829, 4
        %v840 = vsel %vm778, %v839, %v827
        %v842 = vunpack.c.l.s4 1983009808
        %v843 = vunpack.c.0.s8 %v842
        %v844 = vperm.slane %v840, %v843
        %v845 = vsel %vm778, %v832, %v821
        %v847 = vunpack.c.l.s4 1983009808
        %v848 = vunpack.c.0.s8 %v847
        %v849 = vperm.slane %v845, %v848
        %v850 = vrot.slane %v833, 4
        %v851 = vsel %vm778, %v850, %v831
        %v853 = vunpack.c.l.s4 1983009808
        %v854 = vunpack.c.0.s8 %v853
        %v855 = vperm.slane %v851, %v854
        %v856 = vrot.slane %v844, 4
        %v857 = vsel %vm778, %v856, %v838
        %v858 = vrot.slane %v838, 4
        %v859 = vsel %vm778, %v844, %v858
        %v861 = vunpack.c.l.s4 1934713408
        %v862 = vunpack.c.0.s8 %v861
        %v863 = vperm.slane %v857, %v862
        %v865 = vunpack.c.l.s4 1934713408
        %v866 = vunpack.c.0.s8 %v865
        %v867 = vperm.slane %v859, %v866
        %v868 = vrot.slane %v855, 4
        %v869 = vsel %vm778, %v868, %v849
        %v870 = vrot.slane %v849, 4
        %v871 = vsel %vm778, %v855, %v870
        %v873 = vunpack.c.l.s4 1934713408
        %v874 = vunpack.c.0.s8 %v873
        %v875 = vperm.slane %v869, %v874
        %v877 = vunpack.c.l.s4 1934713408
        %v878 = vunpack.c.0.s8 %v877
        %v879 = vperm.slane %v871, %v878
        %v880 = vrot.slane %v875, 4
        %v881 = vsel %vm778, %v880, %v863
        %v882 = vrot.slane %v863, 4
        %v883 = vsel %vm778, %v875, %v882
        %v884 = vrot.slane %v879, 4
        %v885 = vsel %vm778, %v884, %v867
        %v886 = vrot.slane %v867, 4
        %v887 = vsel %vm778, %v879, %v886
        %v888 = vpack.c.bf16 %v881, %v881
        %v889 = vpack.c.bf16 %v883, %v883
        %v890 = vpack.c.bf16 %v885, %v885
        %v891 = vpack.c.bf16 %v887, %v887
        %893 = vrot.lane.b32.xlu0 %v732, 120
        %v894 = vpop.permute.xlu0 %893
        %896 = vrot.lane.b32.xlu0 %v732, 112
        %v897 = vpop.permute.xlu0 %896
        %899 = vrot.lane.b32.xlu0 %v732, 104
        %v900 = vpop.permute.xlu0 %899
        %v902 = vrot.slane %v897, 4
        %v903 = vsel %vm778, %v902, %v732
        %v904 = vrot.slane %v732, 4
        %v905 = vsel %vm778, %v897, %v904
        %v907 = vunpack.c.l.s4 1983009808
        %v908 = vunpack.c.0.s8 %v907
        %v909 = vperm.slane %v903, %v908
        %v911 = vunpack.c.l.s4 1983009808
        %v912 = vunpack.c.0.s8 %v911
        %v913 = vperm.slane %v905, %v912
        %v914 = vrot.slane %v900, 4
        %v915 = vsel %vm778, %v914, %v894
        %v916 = vrot.slane %v894, 4
        %v917 = vsel %vm778, %v900, %v916
        %v919 = vunpack.c.l.s4 1983009808
        %v920 = vunpack.c.0.s8 %v919
        %v921 = vperm.slane %v915, %v920
        %v923 = vunpack.c.l.s4 1983009808
        %v924 = vunpack.c.0.s8 %v923
        %v925 = vperm.slane %v917, %v924
        %v926 = vrot.slane %v921, 4
        %v927 = vsel %vm778, %v926, %v909
        %v928 = vrot.slane %v909, 4
        %v929 = vsel %vm778, %v921, %v928
        %v931 = vunpack.c.l.s4 1934713408
        %v932 = vunpack.c.0.s8 %v931
        %v933 = vperm.slane %v927, %v932
        %v935 = vunpack.c.l.s4 1934713408
        %v936 = vunpack.c.0.s8 %v935
        %v937 = vperm.slane %v929, %v936
        %v938 = vrot.slane %v925, 4
        %v939 = vsel %vm778, %v938, %v913
        %v940 = vrot.slane %v913, 4
        %v941 = vsel %vm778, %v925, %v940
        %v943 = vunpack.c.l.s4 1934713408
        %v944 = vunpack.c.0.s8 %v943
        %v945 = vperm.slane %v939, %v944
        %v947 = vunpack.c.l.s4 1934713408
        %v948 = vunpack.c.0.s8 %v947
        %v949 = vperm.slane %v941, %v948
        %v950 = vrot.slane %v933, 4
        %v951 = vsel %vm778, 0.0, %v950
        %v952 = vrot.slane %v937, 4
        %v953 = vsel %vm778, 0.0, %v952
        %v954 = vrot.slane %v945, 4
        %v955 = vsel %vm778, 0.0, %v954
        %v956 = vrot.slane %v949, 4
        %v957 = vsel %vm778, 0.0, %v956
        %v958 = vsel %vm778, %v952, %v933
        %v960 = vunpack.c.l.s4 1983009808
        %v961 = vunpack.c.0.s8 %v960
        %v962 = vperm.slane %v958, %v961
        %v963 = vrot.slane %v953, 4
        %v964 = vsel %vm778, %v963, %v951
        %v966 = vunpack.c.l.s4 1983009808
        %v967 = vunpack.c.0.s8 %v966
        %v968 = vperm.slane %v964, %v967
        %v969 = vsel %vm778, %v956, %v945
        %v971 = vunpack.c.l.s4 1983009808
        %v972 = vunpack.c.0.s8 %v971
        %v973 = vperm.slane %v969, %v972
        %v974 = vrot.slane %v957, 4
        %v975 = vsel %vm778, %v974, %v955
        %v977 = vunpack.c.l.s4 1983009808
        %v978 = vunpack.c.0.s8 %v977
        %v979 = vperm.slane %v975, %v978
        %v980 = vrot.slane %v968, 4
        %v981 = vsel %vm778, %v980, %v962
        %v982 = vrot.slane %v962, 4
        %v983 = vsel %vm778, %v968, %v982
        %v985 = vunpack.c.l.s4 1934713408
        %v986 = vunpack.c.0.s8 %v985
        %v987 = vperm.slane %v981, %v986
        %v989 = vunpack.c.l.s4 1934713408
        %v990 = vunpack.c.0.s8 %v989
        %v991 = vperm.slane %v983, %v990
        %v992 = vrot.slane %v979, 4
        %v993 = vsel %vm778, %v992, %v973
        %v994 = vrot.slane %v973, 4
        %v995 = vsel %vm778, %v979, %v994
        %v997 = vunpack.c.l.s4 1934713408
        %v998 = vunpack.c.0.s8 %v997
        %v999 = vperm.slane %v993, %v998
        %v1001 = vunpack.c.l.s4 1934713408
        %v1002 = vunpack.c.0.s8 %v1001
        %v1003 = vperm.slane %v995, %v1002
        %v1004 = vrot.slane %v999, 4
        %v1005 = vsel %vm778, %v1004, %v987
        %v1006 = vrot.slane %v987, 4
        %v1007 = vsel %vm778, %v999, %v1006
        %v1008 = vrot.slane %v1003, 4
        %v1009 = vsel %vm778, %v1008, %v991
        %v1010 = vrot.slane %v991, 4
        %v1011 = vsel %vm778, %v1003, %v1010
        %v1012 = vpack.c.bf16 %v1005, %v1005
        %v1013 = vpack.c.bf16 %v1007, %v1007
        %v1014 = vpack.c.bf16 %v1009, %v1009
        %v1015 = vpack.c.bf16 %v1011, %v1011
        %1017 = vrot.lane.b32.xlu0 %v763, 120
        %v1018 = vpop.permute.xlu0 %1017
        %1020 = vrot.lane.b32.xlu0 %v763, 112
        %v1021 = vpop.permute.xlu0 %1020
        %1023 = vrot.lane.b32.xlu0 %v763, 104
        %v1024 = vpop.permute.xlu0 %1023
        %v1026 = vrot.slane %v1021, 4
        %v1027 = vsel %vm778, %v1026, %v763
        %v1028 = vrot.slane %v763, 4
        %v1029 = vsel %vm778, %v1021, %v1028
        %v1031 = vunpack.c.l.s4 1983009808
        %v1032 = vunpack.c.0.s8 %v1031
        %v1033 = vperm.slane %v1027, %v1032
        %v1035 = vunpack.c.l.s4 1983009808
        %v1036 = vunpack.c.0.s8 %v1035
        %v1037 = vperm.slane %v1029, %v1036
        %v1038 = vrot.slane %v1024, 4
        %v1039 = vsel %vm778, %v1038, %v1018
        %v1040 = vrot.slane %v1018, 4
        %v1041 = vsel %vm778, %v1024, %v1040
        %v1043 = vunpack.c.l.s4 1983009808
        %v1044 = vunpack.c.0.s8 %v1043
        %v1045 = vperm.slane %v1039, %v1044
        %v1047 = vunpack.c.l.s4 1983009808
        %v1048 = vunpack.c.0.s8 %v1047
        %v1049 = vperm.slane %v1041, %v1048
        %v1050 = vrot.slane %v1045, 4
        %v1051 = vsel %vm778, %v1050, %v1033
        %v1052 = vrot.slane %v1033, 4
        %v1053 = vsel %vm778, %v1045, %v1052
        %v1055 = vunpack.c.l.s4 1934713408
        %v1056 = vunpack.c.0.s8 %v1055
        %v1057 = vperm.slane %v1051, %v1056
        %v1059 = vunpack.c.l.s4 1934713408
        %v1060 = vunpack.c.0.s8 %v1059
        %v1061 = vperm.slane %v1053, %v1060
        %v1062 = vrot.slane %v1049, 4
        %v1063 = vsel %vm778, %v1062, %v1037
        %v1064 = vrot.slane %v1037, 4
        %v1065 = vsel %vm778, %v1049, %v1064
        %v1067 = vunpack.c.l.s4 1934713408
        %v1068 = vunpack.c.0.s8 %v1067
        %v1069 = vperm.slane %v1063, %v1068
        %v1071 = vunpack.c.l.s4 1934713408
        %v1072 = vunpack.c.0.s8 %v1071
        %v1073 = vperm.slane %v1065, %v1072
        %v1074 = vrot.slane %v1057, 4
        %v1075 = vsel %vm778, 0.0, %v1074
        %v1076 = vrot.slane %v1061, 4
        %v1077 = vsel %vm778, 0.0, %v1076
        %v1078 = vrot.slane %v1069, 4
        %v1079 = vsel %vm778, 0.0, %v1078
        %v1080 = vrot.slane %v1073, 4
        %v1081 = vsel %vm778, 0.0, %v1080
        %v1082 = vsel %vm778, %v1076, %v1057
        %v1084 = vunpack.c.l.s4 1983009808
        %v1085 = vunpack.c.0.s8 %v1084
        %v1086 = vperm.slane %v1082, %v1085
        %v1087 = vrot.slane %v1077, 4
        %v1088 = vsel %vm778, %v1087, %v1075
        %v1090 = vunpack.c.l.s4 1983009808
        %v1091 = vunpack.c.0.s8 %v1090
        %v1092 = vperm.slane %v1088, %v1091
        %v1093 = vsel %vm778, %v1080, %v1069
        %v1095 = vunpack.c.l.s4 1983009808
        %v1096 = vunpack.c.0.s8 %v1095
        %v1097 = vperm.slane %v1093, %v1096
        %v1098 = vrot.slane %v1081, 4
        %v1099 = vsel %vm778, %v1098, %v1079
        %v1101 = vunpack.c.l.s4 1983009808
        %v1102 = vunpack.c.0.s8 %v1101
        %v1103 = vperm.slane %v1099, %v1102
        %v1104 = vrot.slane %v1092, 4
        %v1105 = vsel %vm778, %v1104, %v1086
        %v1106 = vrot.slane %v1086, 4
        %v1107 = vsel %vm778, %v1092, %v1106
        %v1109 = vunpack.c.l.s4 1934713408
        %v1110 = vunpack.c.0.s8 %v1109
        %v1111 = vperm.slane %v1105, %v1110
        %v1113 = vunpack.c.l.s4 1934713408
        %v1114 = vunpack.c.0.s8 %v1113
        %v1115 = vperm.slane %v1107, %v1114
        %v1116 = vrot.slane %v1103, 4
        %v1117 = vsel %vm778, %v1116, %v1097
        %v1118 = vrot.slane %v1097, 4
        %v1119 = vsel %vm778, %v1103, %v1118
        %v1121 = vunpack.c.l.s4 1934713408
        %v1122 = vunpack.c.0.s8 %v1121
        %v1123 = vperm.slane %v1117, %v1122
        %v1125 = vunpack.c.l.s4 1934713408
        %v1126 = vunpack.c.0.s8 %v1125
        %v1127 = vperm.slane %v1119, %v1126
        %v1128 = vrot.slane %v1123, 4
        %v1129 = vsel %vm778, %v1128, %v1111
        %v1130 = vrot.slane %v1111, 4
        %v1131 = vsel %vm778, %v1123, %v1130
        %v1132 = vrot.slane %v1127, 4
        %v1133 = vsel %vm778, %v1132, %v1115
        %v1134 = vrot.slane %v1115, 4
        %v1135 = vsel %vm778, %v1127, %v1134
        %v1136 = vpack.c.bf16 %v1129, %v1129
        %v1137 = vpack.c.bf16 %v1131, %v1131
        %v1138 = vpack.c.bf16 %v1133, %v1133
        %v1139 = vpack.c.bf16 %v1135, %v1135
        %vm1140 = vcmask 64512
        %v1142 = vsel %vm1140, %v888, 0
        %v1145 = vsel %vm1140, %v1012, 0
        %1147 = vmatpush.bf16.xpose.msra.mxu0 0
        %1148 = vmatpush.bf16.xpose.msra.mxu0 0
        %1149 = vmatpush.bf16.xpose.msra.mxu0 0
        %1150 = vmatpush.bf16.xpose.msra.mxu0 0
        %1151 = vmatpush.bf16.xpose.msra.mxu0 0
        %1152 = vmatpush.bf16.xpose.msra.mxu0 0
        %1153 = vmatpush.bf16.xpose.msra.mxu0 0
        %1154 = vmatpush.bf16.xpose.msra.mxu0 %v1145
        %1155 = vmatmul.bf16.gmra.mxu0 %v1142
        %v1156 = vpop.f32.mrf.mxu0
        %v1157 = vadd.f32 0.0, %v1156
        %v1158 = vpop.f32.mrf.mxu0
        %1159 = vdwg.mxu0
        %v1161 = vsel %vm1140, %v889, 0
        %v1164 = vsel %vm1140, %v1013, 0
        %1166 = vmatpush.bf16.xpose.msra.mxu0 0
        %1167 = vmatpush.bf16.xpose.msra.mxu0 0
        %1168 = vmatpush.bf16.xpose.msra.mxu0 0
        %1169 = vmatpush.bf16.xpose.msra.mxu0 0
        %1170 = vmatpush.bf16.xpose.msra.mxu0 0
        %1171 = vmatpush.bf16.xpose.msra.mxu0 0
        %1172 = vmatpush.bf16.xpose.msra.mxu0 0
        %1173 = vmatpush.bf16.xpose.msra.mxu0 %v1164
        %1174 = vmatmul.bf16.gmra.mxu0 %v1161
        %v1175 = vpop.f32.mrf.mxu0
        %v1176 = vadd.f32 0.0, %v1175
        %v1177 = vpop.f32.mrf.mxu0
        %1178 = vdwg.mxu0
        %v1180 = vsel %vm1140, %v890, 0
        %v1183 = vsel %vm1140, %v1014, 0
        %1185 = vmatpush.bf16.xpose.msra.mxu0 0
        %1186 = vmatpush.bf16.xpose.msra.mxu0 0
        %1187 = vmatpush.bf16.xpose.msra.mxu0 0
        %1188 = vmatpush.bf16.xpose.msra.mxu0 0
        %1189 = vmatpush.bf16.xpose.msra.mxu0 0
        %1190 = vmatpush.bf16.xpose.msra.mxu0 0
        %1191 = vmatpush.bf16.xpose.msra.mxu0 0
        %1192 = vmatpush.bf16.xpose.msra.mxu0 %v1183
        %1193 = vmatmul.bf16.gmra.mxu0 %v1180
        %v1194 = vpop.f32.mrf.mxu0
        %v1195 = vadd.f32 0.0, %v1194
        %v1196 = vpop.f32.mrf.mxu0
        %1197 = vdwg.mxu0
        %v1199 = vsel %vm1140, %v891, 0
        %v1202 = vsel %vm1140, %v1015, 0
        %1204 = vmatpush.bf16.xpose.msra.mxu0 0
        %1205 = vmatpush.bf16.xpose.msra.mxu0 0
        %1206 = vmatpush.bf16.xpose.msra.mxu0 0
        %1207 = vmatpush.bf16.xpose.msra.mxu0 0
        %1208 = vmatpush.bf16.xpose.msra.mxu0 0
        %1209 = vmatpush.bf16.xpose.msra.mxu0 0
        %1210 = vmatpush.bf16.xpose.msra.mxu0 0
        %1211 = vmatpush.bf16.xpose.msra.mxu0 %v1202
        %1212 = vmatmul.bf16.gmra.mxu0 %v1199
        %v1213 = vpop.f32.mrf.mxu0
        %v1214 = vadd.f32 0.0, %v1213
        %v1215 = vpop.f32.mrf.mxu0
        %1216 = vdwg.mxu0
        %v1217 = vmul.f32 %v1157, 0.35355338
        %v1218 = vmul.f32 %v1176, 0.35355338
        %v1219 = vmul.f32 %v1195, 0.35355338
        %v1220 = vmul.f32 %v1214, 0.35355338
        %v1221 = vsel %vm1140, %v1217, -inf
        %1222 = vmax.xlane.f32.xlu0 %v1221
        %v1223 = vpop.xlane.xlu0 %1222
        %v1224 = vsel %vm1140, %v1218, -inf
        %1225 = vmax.xlane.f32.xlu0 %v1224
        %v1226 = vpop.xlane.xlu0 %1225
        %v1227 = vsel %vm1140, %v1219, -inf
        %1228 = vmax.xlane.f32.xlu0 %v1227
        %v1229 = vpop.xlane.xlu0 %1228
        %v1230 = vsel %vm1140, %v1220, -inf
        %1231 = vmax.xlane.f32.xlu0 %v1230
        %v1232 = vpop.xlane.xlu0 %1231
        %v1233 = vsub.f32 %v1217, %v1223
        %v1234 = vsub.f32 %v1218, %v1226
        %v1235 = vsub.f32 %v1219, %v1229
        %v1236 = vsub.f32 %v1220, %v1232
        %v1237 = vmul.f32 %v1233, 1.442695
        %v1238 = vpow.pop %v1237
        %v1239 = vmul.f32 %v1234, 1.442695
        %v1240 = vpow.pop %v1239
        %v1241 = vmul.f32 %v1235, 1.442695
        %v1242 = vpow.pop %v1241
        %v1243 = vmul.f32 %v1236, 1.442695
        %v1244 = vpow.pop %v1243
        %v1245 = vsel %vm1140, %v1238, 0.0
        %1246 = vadd.xlane.f32.xlu0 %v1245
        %v1247 = vpop.xlane.xlu0 %1246
        %v1248 = vsel %vm1140, %v1240, 0.0
        %1249 = vadd.xlane.f32.xlu0 %v1248
        %v1250 = vpop.xlane.xlu0 %1249
        %v1251 = vsel %vm1140, %v1242, 0.0
        %1252 = vadd.xlane.f32.xlu0 %v1251
        %v1253 = vpop.xlane.xlu0 %1252
        %v1254 = vsel %vm1140, %v1244, 0.0
        %1255 = vadd.xlane.f32.xlu0 %v1254
        %v1256 = vpop.xlane.xlu0 %1255
        %v1257 = vrcp.pop %v1247
        %v1258 = vrcp.pop %v1250
        %v1259 = vrcp.pop %v1253
        %v1260 = vrcp.pop %v1256
        %v1261 = vmul.f32 %v1238, %v1257
        %v1262 = vmul.f32 %v1240, %v1258
        %v1263 = vmul.f32 %v1242, %v1259
        %v1264 = vmul.f32 %v1244, %v1260
        %v1265 = vpack.c.bf16 %v1261, %v1261
        %v1266 = vpack.c.bf16 %v1262, %v1262
        %v1267 = vpack.c.bf16 %v1263, %v1263
        %v1268 = vpack.c.bf16 %v1264, %v1264
        %v1270 = vsel %vm1140, %v1265, 0
        %vm1272 = vcmask 1043456
        %v1274 = vsel %vm1272, %v1136, 0
        %1276 = vmatpush.bf16.msra.mxu0 0
        %1277 = vmatpush.bf16.msra.mxu0 0
        %1278 = vmatpush.bf16.msra.mxu0 0
        %1279 = vmatpush.bf16.msra.mxu0 0
        %1280 = vmatpush.bf16.msra.mxu0 0
        %1281 = vmatpush.bf16.msra.mxu0 0
        %1282 = vmatpush.bf16.msra.mxu0 0
        %1283 = vmatpush.bf16.msra.mxu0 %v1274
        %1284 = vmatmul.bf16.gmra.mxu0 %v1270
        %v1285 = vpop.f32.mrf.mxu0
        %v1286 = vadd.f32 0.0, %v1285
        %v1287 = vpop.f32.mrf.mxu0
        %1288 = vdwg.mxu0
        %v1290 = vsel %vm1140, %v1266, 0
        %v1293 = vsel %vm1272, %v1137, 0
        %1295 = vmatpush.bf16.msra.mxu0 0
        %1296 = vmatpush.bf16.msra.mxu0 0
        %1297 = vmatpush.bf16.msra.mxu0 0
        %1298 = vmatpush.bf16.msra.mxu0 0
        %1299 = vmatpush.bf16.msra.mxu0 0
        %1300 = vmatpush.bf16.msra.mxu0 0
        %1301 = vmatpush.bf16.msra.mxu0 0
        %1302 = vmatpush.bf16.msra.mxu0 %v1293
        %1303 = vmatmul.bf16.gmra.mxu0 %v1290
        %v1304 = vpop.f32.mrf.mxu0
        %v1305 = vadd.f32 0.0, %v1304
        %v1306 = vpop.f32.mrf.mxu0
        %1307 = vdwg.mxu0
        %v1309 = vsel %vm1140, %v1267, 0
        %v1312 = vsel %vm1272, %v1138, 0
        %1314 = vmatpush.bf16.msra.mxu0 0
        %1315 = vmatpush.bf16.msra.mxu0 0
        %1316 = vmatpush.bf16.msra.mxu0 0
        %1317 = vmatpush.bf16.msra.mxu0 0
        %1318 = vmatpush.bf16.msra.mxu0 0
        %1319 = vmatpush.bf16.msra.mxu0 0
        %1320 = vmatpush.bf16.msra.mxu0 0
        %1321 = vmatpush.bf16.msra.mxu0 %v1312
        %1322 = vmatmul.bf16.gmra.mxu0 %v1309
        %v1323 = vpop.f32.mrf.mxu0
        %v1324 = vadd.f32 0.0, %v1323
        %v1325 = vpop.f32.mrf.mxu0
        %1326 = vdwg.mxu0
        %v1328 = vsel %vm1140, %v1268, 0
        %v1331 = vsel %vm1272, %v1139, 0
        %1333 = vmatpush.bf16.msra.mxu0 0
        %1334 = vmatpush.bf16.msra.mxu0 0
        %1335 = vmatpush.bf16.msra.mxu0 0
        %1336 = vmatpush.bf16.msra.mxu0 0
        %1337 = vmatpush.bf16.msra.mxu0 0
        %1338 = vmatpush.bf16.msra.mxu0 0
        %1339 = vmatpush.bf16.msra.mxu0 0
        %1340 = vmatpush.bf16.msra.mxu0 %v1331
        %1341 = vmatmul.bf16.gmra.mxu0 %v1328
        %v1342 = vpop.f32.mrf.mxu0
        %v1343 = vadd.f32 0.0, %v1342
        %v1344 = vpop.f32.mrf.mxu0
        %1345 = vdwg.mxu0
        %v1346 = vrot.slane %v1324, 4
        %v1347 = vsel %vm778, %v1346, %v1286
        %v1348 = vrot.slane %v1286, 4
        %v1349 = vsel %vm778, %v1324, %v1348
        %v1351 = vunpack.c.l.s4 1983009808
        %v1352 = vunpack.c.0.s8 %v1351
        %v1353 = vperm.slane %v1347, %v1352
        %v1355 = vunpack.c.l.s4 1983009808
        %v1356 = vunpack.c.0.s8 %v1355
        %v1357 = vperm.slane %v1349, %v1356
        %v1358 = vrot.slane %v1343, 4
        %v1359 = vsel %vm778, %v1358, %v1305
        %v1360 = vrot.slane %v1305, 4
        %v1361 = vsel %vm778, %v1343, %v1360
        %v1363 = vunpack.c.l.s4 1983009808
        %v1364 = vunpack.c.0.s8 %v1363
        %v1365 = vperm.slane %v1359, %v1364
        %v1367 = vunpack.c.l.s4 1983009808
        %v1368 = vunpack.c.0.s8 %v1367
        %v1369 = vperm.slane %v1361, %v1368
        %v1370 = vrot.slane %v1365, 4
        %v1371 = vsel %vm778, %v1370, %v1353
        %v1372 = vrot.slane %v1353, 4
        %v1373 = vsel %vm778, %v1365, %v1372
        %v1375 = vunpack.c.l.s4 1934713408
        %v1376 = vunpack.c.0.s8 %v1375
        %v1377 = vperm.slane %v1371, %v1376
        %v1379 = vunpack.c.l.s4 1934713408
        %v1380 = vunpack.c.0.s8 %v1379
        %v1381 = vperm.slane %v1373, %v1380
        %v1382 = vrot.slane %v1369, 4
        %v1383 = vsel %vm778, %v1382, %v1357
        %v1384 = vrot.slane %v1357, 4
        %v1385 = vsel %vm778, %v1369, %v1384
        %v1387 = vunpack.c.l.s4 1934713408
        %v1388 = vunpack.c.0.s8 %v1387
        %v1389 = vperm.slane %v1383, %v1388
        %v1391 = vunpack.c.l.s4 1934713408
        %v1392 = vunpack.c.0.s8 %v1391
        %v1393 = vperm.slane %v1385, %v1392
        %v1394 = vrot.slane %v1377, 4
        %v1395 = vsel %vm778, 0.0, %v1394
        %v1396 = vrot.slane %v1381, 4
        %v1397 = vsel %vm778, 0.0, %v1396
        %v1398 = vrot.slane %v1389, 4
        %v1399 = vsel %vm778, 0.0, %v1398
        %v1400 = vrot.slane %v1393, 4
        %v1401 = vsel %vm778, 0.0, %v1400
        %v1402 = vsel %vm778, %v1396, %v1377
        %v1404 = vunpack.c.l.s4 1983009808
        %v1405 = vunpack.c.0.s8 %v1404
        %v1406 = vperm.slane %v1402, %v1405
        %v1407 = vrot.slane %v1397, 4
        %v1408 = vsel %vm778, %v1407, %v1395
        %v1410 = vunpack.c.l.s4 1983009808
        %v1411 = vunpack.c.0.s8 %v1410
        %v1412 = vperm.slane %v1408, %v1411
        %v1413 = vsel %vm778, %v1400, %v1389
        %v1415 = vunpack.c.l.s4 1983009808
        %v1416 = vunpack.c.0.s8 %v1415
        %v1417 = vperm.slane %v1413, %v1416
        %v1418 = vrot.slane %v1401, 4
        %v1419 = vsel %vm778, %v1418, %v1399
        %v1421 = vunpack.c.l.s4 1983009808
        %v1422 = vunpack.c.0.s8 %v1421
        %v1423 = vperm.slane %v1419, %v1422
        %v1424 = vrot.slane %v1412, 4
        %v1425 = vsel %vm778, %v1424, %v1406
        %v1426 = vrot.slane %v1406, 4
        %v1427 = vsel %vm778, %v1412, %v1426
        %v1429 = vunpack.c.l.s4 1934713408
        %v1430 = vunpack.c.0.s8 %v1429
        %v1431 = vperm.slane %v1425, %v1430
        %v1433 = vunpack.c.l.s4 1934713408
        %v1434 = vunpack.c.0.s8 %v1433
        %v1435 = vperm.slane %v1427, %v1434
        %v1436 = vrot.slane %v1423, 4
        %v1437 = vsel %vm778, %v1436, %v1417
        %v1438 = vrot.slane %v1417, 4
        %v1439 = vsel %vm778, %v1423, %v1438
        %v1441 = vunpack.c.l.s4 1934713408
        %v1442 = vunpack.c.0.s8 %v1441
        %v1443 = vperm.slane %v1437, %v1442
        %v1445 = vunpack.c.l.s4 1934713408
        %v1446 = vunpack.c.0.s8 %v1445
        %v1447 = vperm.slane %v1439, %v1446
        %v1448 = vrot.slane %v1443, 4
        %v1449 = vsel %vm778, %v1448, %v1431
        %v1450 = vrot.slane %v1431, 4
        %v1451 = vsel %vm778, %v1443, %v1450
        %v1452 = vrot.slane %v1447, 4
        %v1453 = vsel %vm778, %v1452, %v1435
        %v1454 = vrot.slane %v1435, 4
        %v1455 = vsel %vm778, %v1447, %v1454
        %1457 = vrot.lane.b32.xlu0 %v1451, 8
        %v1458 = vpop.permute.xlu0 %1457
        %1461 = vrot.lane.b32.xlu0 %v1453, 16
        %v1462 = vpop.permute.xlu0 %1461
        %1465 = vrot.lane.b32.xlu0 %v1455, 24
        %v1466 = vpop.permute.xlu0 %1465
        %v1468 = vsel %vm1140, %v1449, %v1458
        %vm1469 = vcmask 130048
        %v1470 = vsel %vm1469, %v1468, %v1462
        %vm1471 = vcmask 195584
        %v1472 = vsel %vm1471, %v1470, %v1466
        %1474 = vrot.lane.b32.xlu0 %v703, 120
        %v1475 = vpop.permute.xlu0 %1474
        %1477 = vrot.lane.b32.xlu0 %v703, 112
        %v1478 = vpop.permute.xlu0 %1477
        %1480 = vrot.lane.b32.xlu0 %v703, 104
        %v1481 = vpop.permute.xlu0 %1480
        %v1483 = vrot.slane %v1478, 4
        %v1484 = vsel %vm778, %v1483, %v703
        %v1485 = vrot.slane %v703, 4
        %v1486 = vsel %vm778, %v1478, %v1485
        %v1488 = vunpack.c.l.s4 1983009808
        %v1489 = vunpack.c.0.s8 %v1488
        %v1490 = vperm.slane %v1484, %v1489
        %v1492 = vunpack.c.l.s4 1983009808
        %v1493 = vunpack.c.0.s8 %v1492
        %v1494 = vperm.slane %v1486, %v1493
        %v1495 = vrot.slane %v1481, 4
        %v1496 = vsel %vm778, %v1495, %v1475
        %v1497 = vrot.slane %v1475, 4
        %v1498 = vsel %vm778, %v1481, %v1497
        %v1500 = vunpack.c.l.s4 1983009808
        %v1501 = vunpack.c.0.s8 %v1500
        %v1502 = vperm.slane %v1496, %v1501
        %v1504 = vunpack.c.l.s4 1983009808
        %v1505 = vunpack.c.0.s8 %v1504
        %v1506 = vperm.slane %v1498, %v1505
        %v1507 = vrot.slane %v1502, 4
        %v1508 = vsel %vm778, %v1507, %v1490
        %v1509 = vrot.slane %v1490, 4
        %v1510 = vsel %vm778, %v1502, %v1509
        %v1512 = vunpack.c.l.s4 1934713408
        %v1513 = vunpack.c.0.s8 %v1512
        %v1514 = vperm.slane %v1508, %v1513
        %v1516 = vunpack.c.l.s4 1934713408
        %v1517 = vunpack.c.0.s8 %v1516
        %v1518 = vperm.slane %v1510, %v1517
        %v1519 = vrot.slane %v1506, 4
        %v1520 = vsel %vm778, %v1519, %v1494
        %v1521 = vrot.slane %v1494, 4
        %v1522 = vsel %vm778, %v1506, %v1521
        %v1524 = vunpack.c.l.s4 1934713408
        %v1525 = vunpack.c.0.s8 %v1524
        %v1526 = vperm.slane %v1520, %v1525
        %v1528 = vunpack.c.l.s4 1934713408
        %v1529 = vunpack.c.0.s8 %v1528
        %v1530 = vperm.slane %v1522, %v1529
        %v1531 = vrot.slane %v1514, 4
        %v1532 = vsel %vm778, 0.0, %v1531
        %v1533 = vrot.slane %v1518, 4
        %v1534 = vsel %vm778, 0.0, %v1533
        %v1535 = vrot.slane %v1526, 4
        %v1536 = vsel %vm778, 0.0, %v1535
        %v1537 = vrot.slane %v1530, 4
        %v1538 = vsel %vm778, 0.0, %v1537
        %v1539 = vsel %vm778, %v1533, %v1514
        %v1541 = vunpack.c.l.s4 1983009808
        %v1542 = vunpack.c.0.s8 %v1541
        %v1543 = vperm.slane %v1539, %v1542
        %v1544 = vrot.slane %v1534, 4
        %v1545 = vsel %vm778, %v1544, %v1532
        %v1547 = vunpack.c.l.s4 1983009808
        %v1548 = vunpack.c.0.s8 %v1547
        %v1549 = vperm.slane %v1545, %v1548
        %v1550 = vsel %vm778, %v1537, %v1526
        %v1552 = vunpack.c.l.s4 1983009808
        %v1553 = vunpack.c.0.s8 %v1552
        %v1554 = vperm.slane %v1550, %v1553
        %v1555 = vrot.slane %v1538, 4
        %v1556 = vsel %vm778, %v1555, %v1536
        %v1558 = vunpack.c.l.s4 1983009808
        %v1559 = vunpack.c.0.s8 %v1558
        %v1560 = vperm.slane %v1556, %v1559
        %v1561 = vrot.slane %v1549, 4
        %v1562 = vsel %vm778, %v1561, %v1543
        %v1563 = vrot.slane %v1543, 4
        %v1564 = vsel %vm778, %v1549, %v1563
        %v1566 = vunpack.c.l.s4 1934713408
        %v1567 = vunpack.c.0.s8 %v1566
        %v1568 = vperm.slane %v1562, %v1567
        %v1570 = vunpack.c.l.s4 1934713408
        %v1571 = vunpack.c.0.s8 %v1570
        %v1572 = vperm.slane %v1564, %v1571
        %v1573 = vrot.slane %v1560, 4
        %v1574 = vsel %vm778, %v1573, %v1554
        %v1575 = vrot.slane %v1554, 4
        %v1576 = vsel %vm778, %v1560, %v1575
        %v1578 = vunpack.c.l.s4 1934713408
        %v1579 = vunpack.c.0.s8 %v1578
        %v1580 = vperm.slane %v1574, %v1579
        %v1582 = vunpack.c.l.s4 1934713408
        %v1583 = vunpack.c.0.s8 %v1582
        %v1584 = vperm.slane %v1576, %v1583
        %v1585 = vrot.slane %v1580, 4
        %v1586 = vsel %vm778, %v1585, %v1568
        %v1587 = vrot.slane %v1568, 4
        %v1588 = vsel %vm778, %v1580, %v1587
        %v1589 = vrot.slane %v1584, 4
        %v1590 = vsel %vm778, %v1589, %v1572
        %v1591 = vrot.slane %v1572, 4
        %v1592 = vsel %vm778, %v1584, %v1591
        %v1593 = vpack.c.bf16 %v1586, %v1586
        %v1594 = vpack.c.bf16 %v1588, %v1588
        %v1595 = vpack.c.bf16 %v1590, %v1590
        %v1596 = vpack.c.bf16 %v1592, %v1592
        %1598 = vrot.lane.b32.xlu0 %v734, 120
        %v1599 = vpop.permute.xlu0 %1598
        %1601 = vrot.lane.b32.xlu0 %v734, 112
        %v1602 = vpop.permute.xlu0 %1601
        %1604 = vrot.lane.b32.xlu0 %v734, 104
        %v1605 = vpop.permute.xlu0 %1604
        %v1607 = vrot.slane %v1602, 4
        %v1608 = vsel %vm778, %v1607, %v734
        %v1609 = vrot.slane %v734, 4
        %v1610 = vsel %vm778, %v1602, %v1609
        %v1612 = vunpack.c.l.s4 1983009808
        %v1613 = vunpack.c.0.s8 %v1612
        %v1614 = vperm.slane %v1608, %v1613
        %v1616 = vunpack.c.l.s4 1983009808
        %v1617 = vunpack.c.0.s8 %v1616
        %v1618 = vperm.slane %v1610, %v1617
        %v1619 = vrot.slane %v1605, 4
        %v1620 = vsel %vm778, %v1619, %v1599
        %v1621 = vrot.slane %v1599, 4
        %v1622 = vsel %vm778, %v1605, %v1621
        %v1624 = vunpack.c.l.s4 1983009808
        %v1625 = vunpack.c.0.s8 %v1624
        %v1626 = vperm.slane %v1620, %v1625
        %v1628 = vunpack.c.l.s4 1983009808
        %v1629 = vunpack.c.0.s8 %v1628
        %v1630 = vperm.slane %v1622, %v1629
        %v1631 = vrot.slane %v1626, 4
        %v1632 = vsel %vm778, %v1631, %v1614
        %v1633 = vrot.slane %v1614, 4
        %v1634 = vsel %vm778, %v1626, %v1633
        %v1636 = vunpack.c.l.s4 1934713408
        %v1637 = vunpack.c.0.s8 %v1636
        %v1638 = vperm.slane %v1632, %v1637
        %v1640 = vunpack.c.l.s4 1934713408
        %v1641 = vunpack.c.0.s8 %v1640
        %v1642 = vperm.slane %v1634, %v1641
        %v1643 = vrot.slane %v1630, 4
        %v1644 = vsel %vm778, %v1643, %v1618
        %v1645 = vrot.slane %v1618, 4
        %v1646 = vsel %vm778, %v1630, %v1645
        %v1648 = vunpack.c.l.s4 1934713408
        %v1649 = vunpack.c.0.s8 %v1648
        %v1650 = vperm.slane %v1644, %v1649
        %v1652 = vunpack.c.l.s4 1934713408
        %v1653 = vunpack.c.0.s8 %v1652
        %v1654 = vperm.slane %v1646, %v1653
        %v1655 = vrot.slane %v1638, 4
        %v1656 = vsel %vm778, 0.0, %v1655
        %v1657 = vrot.slane %v1642, 4
        %v1658 = vsel %vm778, 0.0, %v1657
        %v1659 = vrot.slane %v1650, 4
        %v1660 = vsel %vm778, 0.0, %v1659
        %v1661 = vrot.slane %v1654, 4
        %v1662 = vsel %vm778, 0.0, %v1661
        %v1663 = vsel %vm778, %v1657, %v1638
        %v1665 = vunpack.c.l.s4 1983009808
        %v1666 = vunpack.c.0.s8 %v1665
        %v1667 = vperm.slane %v1663, %v1666
        %v1668 = vrot.slane %v1658, 4
        %v1669 = vsel %vm778, %v1668, %v1656
        %v1671 = vunpack.c.l.s4 1983009808
        %v1672 = vunpack.c.0.s8 %v1671
        %v1673 = vperm.slane %v1669, %v1672
        %v1674 = vsel %vm778, %v1661, %v1650
        %v1676 = vunpack.c.l.s4 1983009808
        %v1677 = vunpack.c.0.s8 %v1676
        %v1678 = vperm.slane %v1674, %v1677
        %v1679 = vrot.slane %v1662, 4
        %v1680 = vsel %vm778, %v1679, %v1660
        %v1682 = vunpack.c.l.s4 1983009808
        %v1683 = vunpack.c.0.s8 %v1682
        %v1684 = vperm.slane %v1680, %v1683
        %v1685 = vrot.slane %v1673, 4
        %v1686 = vsel %vm778, %v1685, %v1667
        %v1687 = vrot.slane %v1667, 4
        %v1688 = vsel %vm778, %v1673, %v1687
        %v1690 = vunpack.c.l.s4 1934713408
        %v1691 = vunpack.c.0.s8 %v1690
        %v1692 = vperm.slane %v1686, %v1691
        %v1694 = vunpack.c.l.s4 1934713408
        %v1695 = vunpack.c.0.s8 %v1694
        %v1696 = vperm.slane %v1688, %v1695
        %v1697 = vrot.slane %v1684, 4
        %v1698 = vsel %vm778, %v1697, %v1678
        %v1699 = vrot.slane %v1678, 4
        %v1700 = vsel %vm778, %v1684, %v1699
        %v1702 = vunpack.c.l.s4 1934713408
        %v1703 = vunpack.c.0.s8 %v1702
        %v1704 = vperm.slane %v1698, %v1703
        %v1706 = vunpack.c.l.s4 1934713408
        %v1707 = vunpack.c.0.s8 %v1706
        %v1708 = vperm.slane %v1700, %v1707
        %v1709 = vrot.slane %v1704, 4
        %v1710 = vsel %vm778, %v1709, %v1692
        %v1711 = vrot.slane %v1692, 4
        %v1712 = vsel %vm778, %v1704, %v1711
        %v1713 = vrot.slane %v1708, 4
        %v1714 = vsel %vm778, %v1713, %v1696
        %v1715 = vrot.slane %v1696, 4
        %v1716 = vsel %vm778, %v1708, %v1715
        %v1717 = vpack.c.bf16 %v1710, %v1710
        %v1718 = vpack.c.bf16 %v1712, %v1712
        %v1719 = vpack.c.bf16 %v1714, %v1714
        %v1720 = vpack.c.bf16 %v1716, %v1716
        %1722 = vrot.lane.b32.xlu0 %v765, 120
        %v1723 = vpop.permute.xlu0 %1722
        %1725 = vrot.lane.b32.xlu0 %v765, 112
        %v1726 = vpop.permute.xlu0 %1725
        %1728 = vrot.lane.b32.xlu0 %v765, 104
        %v1729 = vpop.permute.xlu0 %1728
        %v1731 = vrot.slane %v1726, 4
        %v1732 = vsel %vm778, %v1731, %v765
        %v1733 = vrot.slane %v765, 4
        %v1734 = vsel %vm778, %v1726, %v1733
        %v1736 = vunpack.c.l.s4 1983009808
        %v1737 = vunpack.c.0.s8 %v1736
        %v1738 = vperm.slane %v1732, %v1737
        %v1740 = vunpack.c.l.s4 1983009808
        %v1741 = vunpack.c.0.s8 %v1740
        %v1742 = vperm.slane %v1734, %v1741
        %v1743 = vrot.slane %v1729, 4
        %v1744 = vsel %vm778, %v1743, %v1723
        %v1745 = vrot.slane %v1723, 4
        %v1746 = vsel %vm778, %v1729, %v1745
        %v1748 = vunpack.c.l.s4 1983009808
        %v1749 = vunpack.c.0.s8 %v1748
        %v1750 = vperm.slane %v1744, %v1749
        %v1752 = vunpack.c.l.s4 1983009808
        %v1753 = vunpack.c.0.s8 %v1752
        %v1754 = vperm.slane %v1746, %v1753
        %v1755 = vrot.slane %v1750, 4
        %v1756 = vsel %vm778, %v1755, %v1738
        %v1757 = vrot.slane %v1738, 4
        %v1758 = vsel %vm778, %v1750, %v1757
        %v1760 = vunpack.c.l.s4 1934713408
        %v1761 = vunpack.c.0.s8 %v1760
        %v1762 = vperm.slane %v1756, %v1761
        %v1764 = vunpack.c.l.s4 1934713408
        %v1765 = vunpack.c.0.s8 %v1764
        %v1766 = vperm.slane %v1758, %v1765
        %v1767 = vrot.slane %v1754, 4
        %v1768 = vsel %vm778, %v1767, %v1742
        %v1769 = vrot.slane %v1742, 4
        %v1770 = vsel %vm778, %v1754, %v1769
        %v1772 = vunpack.c.l.s4 1934713408
        %v1773 = vunpack.c.0.s8 %v1772
        %v1774 = vperm.slane %v1768, %v1773
        %v1776 = vunpack.c.l.s4 1934713408
        %v1777 = vunpack.c.0.s8 %v1776
        %v1778 = vperm.slane %v1770, %v1777
        %v1779 = vrot.slane %v1762, 4
        %v1780 = vsel %vm778, 0.0, %v1779
        %v1781 = vrot.slane %v1766, 4
        %v1782 = vsel %vm778, 0.0, %v1781
        %v1783 = vrot.slane %v1774, 4
        %v1784 = vsel %vm778, 0.0, %v1783
        %v1785 = vrot.slane %v1778, 4
        %v1786 = vsel %vm778, 0.0, %v1785
        %v1787 = vsel %vm778, %v1781, %v1762
        %v1789 = vunpack.c.l.s4 1983009808
        %v1790 = vunpack.c.0.s8 %v1789
        %v1791 = vperm.slane %v1787, %v1790
        %v1792 = vrot.slane %v1782, 4
        %v1793 = vsel %vm778, %v1792, %v1780
        %v1795 = vunpack.c.l.s4 1983009808
        %v1796 = vunpack.c.0.s8 %v1795
        %v1797 = vperm.slane %v1793, %v1796
        %v1798 = vsel %vm778, %v1785, %v1774
        %v1800 = vunpack.c.l.s4 1983009808
        %v1801 = vunpack.c.0.s8 %v1800
        %v1802 = vperm.slane %v1798, %v1801
        %v1803 = vrot.slane %v1786, 4
        %v1804 = vsel %vm778, %v1803, %v1784
        %v1806 = vunpack.c.l.s4 1983009808
        %v1807 = vunpack.c.0.s8 %v1806
        %v1808 = vperm.slane %v1804, %v1807
        %v1809 = vrot.slane %v1797, 4
        %v1810 = vsel %vm778, %v1809, %v1791
        %v1811 = vrot.slane %v1791, 4
        %v1812 = vsel %vm778, %v1797, %v1811
        %v1814 = vunpack.c.l.s4 1934713408
        %v1815 = vunpack.c.0.s8 %v1814
        %v1816 = vperm.slane %v1810, %v1815
        %v1818 = vunpack.c.l.s4 1934713408
        %v1819 = vunpack.c.0.s8 %v1818
        %v1820 = vperm.slane %v1812, %v1819
        %v1821 = vrot.slane %v1808, 4
        %v1822 = vsel %vm778, %v1821, %v1802
        %v1823 = vrot.slane %v1802, 4
        %v1824 = vsel %vm778, %v1808, %v1823
        %v1826 = vunpack.c.l.s4 1934713408
        %v1827 = vunpack.c.0.s8 %v1826
        %v1828 = vperm.slane %v1822, %v1827
        %v1830 = vunpack.c.l.s4 1934713408
        %v1831 = vunpack.c.0.s8 %v1830
        %v1832 = vperm.slane %v1824, %v1831
        %v1833 = vrot.slane %v1828, 4
        %v1834 = vsel %vm778, %v1833, %v1816
        %v1835 = vrot.slane %v1816, 4
        %v1836 = vsel %vm778, %v1828, %v1835
        %v1837 = vrot.slane %v1832, 4
        %v1838 = vsel %vm778, %v1837, %v1820
        %v1839 = vrot.slane %v1820, 4
        %v1840 = vsel %vm778, %v1832, %v1839
        %v1841 = vpack.c.bf16 %v1834, %v1834
        %v1842 = vpack.c.bf16 %v1836, %v1836
        %v1843 = vpack.c.bf16 %v1838, %v1838
        %v1844 = vpack.c.bf16 %v1840, %v1840
        %v1846 = vsel %vm1140, %v1593, 0
        %v1849 = vsel %vm1140, %v1717, 0
        %1851 = vmatpush.bf16.xpose.msra.mxu0 0
        %1852 = vmatpush.bf16.xpose.msra.mxu0 0
        %1853 = vmatpush.bf16.xpose.msra.mxu0 0
        %1854 = vmatpush.bf16.xpose.msra.mxu0 0
        %1855 = vmatpush.bf16.xpose.msra.mxu0 0
        %1856 = vmatpush.bf16.xpose.msra.mxu0 0
        %1857 = vmatpush.bf16.xpose.msra.mxu0 0
        %1858 = vmatpush.bf16.xpose.msra.mxu0 %v1849
        %1859 = vmatmul.bf16.gmra.mxu0 %v1846
        %v1860 = vpop.f32.mrf.mxu0
        %v1861 = vadd.f32 0.0, %v1860
        %v1862 = vpop.f32.mrf.mxu0
        %1863 = vdwg.mxu0
        %v1865 = vsel %vm1140, %v1594, 0
        %v1868 = vsel %vm1140, %v1718, 0
        %1870 = vmatpush.bf16.xpose.msra.mxu0 0
        %1871 = vmatpush.bf16.xpose.msra.mxu0 0
        %1872 = vmatpush.bf16.xpose.msra.mxu0 0
        %1873 = vmatpush.bf16.xpose.msra.mxu0 0
        %1874 = vmatpush.bf16.xpose.msra.mxu0 0
        %1875 = vmatpush.bf16.xpose.msra.mxu0 0
        %1876 = vmatpush.bf16.xpose.msra.mxu0 0
        %1877 = vmatpush.bf16.xpose.msra.mxu0 %v1868
        %1878 = vmatmul.bf16.gmra.mxu0 %v1865
        %v1879 = vpop.f32.mrf.mxu0
        %v1880 = vadd.f32 0.0, %v1879
        %v1881 = vpop.f32.mrf.mxu0
        %1882 = vdwg.mxu0
        %v1884 = vsel %vm1140, %v1595, 0
        %v1887 = vsel %vm1140, %v1719, 0
        %1889 = vmatpush.bf16.xpose.msra.mxu0 0
        %1890 = vmatpush.bf16.xpose.msra.mxu0 0
        %1891 = vmatpush.bf16.xpose.msra.mxu0 0
        %1892 = vmatpush.bf16.xpose.msra.mxu0 0
        %1893 = vmatpush.bf16.xpose.msra.mxu0 0
        %1894 = vmatpush.bf16.xpose.msra.mxu0 0
        %1895 = vmatpush.bf16.xpose.msra.mxu0 0
        %1896 = vmatpush.bf16.xpose.msra.mxu0 %v1887
        %1897 = vmatmul.bf16.gmra.mxu0 %v1884
        %v1898 = vpop.f32.mrf.mxu0
        %v1899 = vadd.f32 0.0, %v1898
        %v1900 = vpop.f32.mrf.mxu0
        %1901 = vdwg.mxu0
        %v1903 = vsel %vm1140, %v1596, 0
        %v1906 = vsel %vm1140, %v1720, 0
        %1908 = vmatpush.bf16.xpose.msra.mxu0 0
        %1909 = vmatpush.bf16.xpose.msra.mxu0 0
        %1910 = vmatpush.bf16.xpose.msra.mxu0 0
        %1911 = vmatpush.bf16.xpose.msra.mxu0 0
        %1912 = vmatpush.bf16.xpose.msra.mxu0 0
        %1913 = vmatpush.bf16.xpose.msra.mxu0 0
        %1914 = vmatpush.bf16.xpose.msra.mxu0 0
        %1915 = vmatpush.bf16.xpose.msra.mxu0 %v1906
        %1916 = vmatmul.bf16.gmra.mxu0 %v1903
        %v1917 = vpop.f32.mrf.mxu0
        %v1918 = vadd.f32 0.0, %v1917
        %v1919 = vpop.f32.mrf.mxu0
        %1920 = vdwg.mxu0
        %v1921 = vmul.f32 %v1861, 0.35355338
        %v1922 = vmul.f32 %v1880, 0.35355338
        %v1923 = vmul.f32 %v1899, 0.35355338
        %v1924 = vmul.f32 %v1918, 0.35355338
        %v1925 = vsel %vm1140, %v1921, -inf
        %1926 = vmax.xlane.f32.xlu0 %v1925
        %v1927 = vpop.xlane.xlu0 %1926
        %v1928 = vsel %vm1140, %v1922, -inf
        %1929 = vmax.xlane.f32.xlu0 %v1928
        %v1930 = vpop.xlane.xlu0 %1929
        %v1931 = vsel %vm1140, %v1923, -inf
        %1932 = vmax.xlane.f32.xlu0 %v1931
        %v1933 = vpop.xlane.xlu0 %1932
        %v1934 = vsel %vm1140, %v1924, -inf
        %1935 = vmax.xlane.f32.xlu0 %v1934
        %v1936 = vpop.xlane.xlu0 %1935
        %v1937 = vsub.f32 %v1921, %v1927
        %v1938 = vsub.f32 %v1922, %v1930
        %v1939 = vsub.f32 %v1923, %v1933
        %v1940 = vsub.f32 %v1924, %v1936
        %v1941 = vmul.f32 %v1937, 1.442695
        %v1942 = vpow.pop %v1941
        %v1943 = vmul.f32 %v1938, 1.442695
        %v1944 = vpow.pop %v1943
        %v1945 = vmul.f32 %v1939, 1.442695
        %v1946 = vpow.pop %v1945
        %v1947 = vmul.f32 %v1940, 1.442695
        %v1948 = vpow.pop %v1947
        %v1949 = vsel %vm1140, %v1942, 0.0
        %1950 = vadd.xlane.f32.xlu0 %v1949
        %v1951 = vpop.xlane.xlu0 %1950
        %v1952 = vsel %vm1140, %v1944, 0.0
        %1953 = vadd.xlane.f32.xlu0 %v1952
        %v1954 = vpop.xlane.xlu0 %1953
        %v1955 = vsel %vm1140, %v1946, 0.0
        %1956 = vadd.xlane.f32.xlu0 %v1955
        %v1957 = vpop.xlane.xlu0 %1956
        %v1958 = vsel %vm1140, %v1948, 0.0
        %1959 = vadd.xlane.f32.xlu0 %v1958
        %v1960 = vpop.xlane.xlu0 %1959
        %v1961 = vrcp.pop %v1951
        %v1962 = vrcp.pop %v1954
        %v1963 = vrcp.pop %v1957
        %v1964 = vrcp.pop %v1960
        %v1965 = vmul.f32 %v1942, %v1961
        %v1966 = vmul.f32 %v1944, %v1962
        %v1967 = vmul.f32 %v1946, %v1963
        %v1968 = vmul.f32 %v1948, %v1964
        %v1969 = vpack.c.bf16 %v1965, %v1965
        %v1970 = vpack.c.bf16 %v1966, %v1966
        %v1971 = vpack.c.bf16 %v1967, %v1967
        %v1972 = vpack.c.bf16 %v1968, %v1968
        %v1974 = vsel %vm1140, %v1969, 0
        %v1977 = vsel %vm1272, %v1841, 0
        %1979 = vmatpush.bf16.msra.mxu0 0
        %1980 = vmatpush.bf16.msra.mxu0 0
        %1981 = vmatpush.bf16.msra.mxu0 0
        %1982 = vmatpush.bf16.msra.mxu0 0
        %1983 = vmatpush.bf16.msra.mxu0 0
        %1984 = vmatpush.bf16.msra.mxu0 0
        %1985 = vmatpush.bf16.msra.mxu0 0
        %1986 = vmatpush.bf16.msra.mxu0 %v1977
        %1987 = vmatmul.bf16.gmra.mxu0 %v1974
        %v1988 = vpop.f32.mrf.mxu0
        %v1989 = vadd.f32 0.0, %v1988
        %v1990 = vpop.f32.mrf.mxu0
        %1991 = vdwg.mxu0
        %v1993 = vsel %vm1140, %v1970, 0
        %v1996 = vsel %vm1272, %v1842, 0
        %1998 = vmatpush.bf16.msra.mxu0 0
        %1999 = vmatpush.bf16.msra.mxu0 0
        %2000 = vmatpush.bf16.msra.mxu0 0
        %2001 = vmatpush.bf16.msra.mxu0 0
        %2002 = vmatpush.bf16.msra.mxu0 0
        %2003 = vmatpush.bf16.msra.mxu0 0
        %2004 = vmatpush.bf16.msra.mxu0 0
        %2005 = vmatpush.bf16.msra.mxu0 %v1996
        %2006 = vmatmul.bf16.gmra.mxu0 %v1993
        %v2007 = vpop.f32.mrf.mxu0
        %v2008 = vadd.f32 0.0, %v2007
        %v2009 = vpop.f32.mrf.mxu0
        %2010 = vdwg.mxu0
        %v2012 = vsel %vm1140, %v1971, 0
        %v2015 = vsel %vm1272, %v1843, 0
        %2017 = vmatpush.bf16.msra.mxu0 0
        %2018 = vmatpush.bf16.msra.mxu0 0
        %2019 = vmatpush.bf16.msra.mxu0 0
        %2020 = vmatpush.bf16.msra.mxu0 0
        %2021 = vmatpush.bf16.msra.mxu0 0
        %2022 = vmatpush.bf16.msra.mxu0 0
        %2023 = vmatpush.bf16.msra.mxu0 0
        %2024 = vmatpush.bf16.msra.mxu0 %v2015
        %2025 = vmatmul.bf16.gmra.mxu0 %v2012
        %v2026 = vpop.f32.mrf.mxu0
        %v2027 = vadd.f32 0.0, %v2026
        %v2028 = vpop.f32.mrf.mxu0
        %2029 = vdwg.mxu0
        %v2031 = vsel %vm1140, %v1972, 0
        %v2034 = vsel %vm1272, %v1844, 0
        %2036 = vmatpush.bf16.msra.mxu0 0
        %2037 = vmatpush.bf16.msra.mxu0 0
        %2038 = vmatpush.bf16.msra.mxu0 0
        %2039 = vmatpush.bf16.msra.mxu0 0
        %2040 = vmatpush.bf16.msra.mxu0 0
        %2041 = vmatpush.bf16.msra.mxu0 0
        %2042 = vmatpush.bf16.msra.mxu0 0
        %2043 = vmatpush.bf16.msra.mxu0 %v2034
        %2044 = vmatmul.bf16.gmra.mxu0 %v2031
        %v2045 = vpop.f32.mrf.mxu0
        %v2046 = vadd.f32 0.0, %v2045
        %v2047 = vpop.f32.mrf.mxu0
        %2048 = vdwg.mxu0
        %v2049 = vrot.slane %v2027, 4
        %v2050 = vsel %vm778, %v2049, %v1989
        %v2051 = vrot.slane %v1989, 4
        %v2052 = vsel %vm778, %v2027, %v2051
        %v2054 = vunpack.c.l.s4 1983009808
        %v2055 = vunpack.c.0.s8 %v2054
        %v2056 = vperm.slane %v2050, %v2055
        %v2058 = vunpack.c.l.s4 1983009808
        %v2059 = vunpack.c.0.s8 %v2058
        %v2060 = vperm.slane %v2052, %v2059
        %v2061 = vrot.slane %v2046, 4
        %v2062 = vsel %vm778, %v2061, %v2008
        %v2063 = vrot.slane %v2008, 4
        %v2064 = vsel %vm778, %v2046, %v2063
        %v2066 = vunpack.c.l.s4 1983009808
        %v2067 = vunpack.c.0.s8 %v2066
        %v2068 = vperm.slane %v2062, %v2067
        %v2070 = vunpack.c.l.s4 1983009808
        %v2071 = vunpack.c.0.s8 %v2070
        %v2072 = vperm.slane %v2064, %v2071
        %v2073 = vrot.slane %v2068, 4
        %v2074 = vsel %vm778, %v2073, %v2056
        %v2075 = vrot.slane %v2056, 4
        %v2076 = vsel %vm778, %v2068, %v2075
        %v2078 = vunpack.c.l.s4 1934713408
        %v2079 = vunpack.c.0.s8 %v2078
        %v2080 = vperm.slane %v2074, %v2079
        %v2082 = vunpack.c.l.s4 1934713408
        %v2083 = vunpack.c.0.s8 %v2082
        %v2084 = vperm.slane %v2076, %v2083
        %v2085 = vrot.slane %v2072, 4
        %v2086 = vsel %vm778, %v2085, %v2060
        %v2087 = vrot.slane %v2060, 4
        %v2088 = vsel %vm778, %v2072, %v2087
        %v2090 = vunpack.c.l.s4 1934713408
        %v2091 = vunpack.c.0.s8 %v2090
        %v2092 = vperm.slane %v2086, %v2091
        %v2094 = vunpack.c.l.s4 1934713408
        %v2095 = vunpack.c.0.s8 %v2094
        %v2096 = vperm.slane %v2088, %v2095
        %v2097 = vrot.slane %v2080, 4
        %v2098 = vsel %vm778, 0.0, %v2097
        %v2099 = vrot.slane %v2084, 4
        %v2100 = vsel %vm778, 0.0, %v2099
        %v2101 = vrot.slane %v2092, 4
        %v2102 = vsel %vm778, 0.0, %v2101
        %v2103 = vrot.slane %v2096, 4
        %v2104 = vsel %vm778, 0.0, %v2103
        %v2105 = vsel %vm778, %v2099, %v2080
        %v2107 = vunpack.c.l.s4 1983009808
        %v2108 = vunpack.c.0.s8 %v2107
        %v2109 = vperm.slane %v2105, %v2108
        %v2110 = vrot.slane %v2100, 4
        %v2111 = vsel %vm778, %v2110, %v2098
        %v2113 = vunpack.c.l.s4 1983009808
        %v2114 = vunpack.c.0.s8 %v2113
        %v2115 = vperm.slane %v2111, %v2114
        %v2116 = vsel %vm778, %v2103, %v2092
        %v2118 = vunpack.c.l.s4 1983009808
        %v2119 = vunpack.c.0.s8 %v2118
        %v2120 = vperm.slane %v2116, %v2119
        %v2121 = vrot.slane %v2104, 4
        %v2122 = vsel %vm778, %v2121, %v2102
        %v2124 = vunpack.c.l.s4 1983009808
        %v2125 = vunpack.c.0.s8 %v2124
        %v2126 = vperm.slane %v2122, %v2125
        %v2127 = vrot.slane %v2115, 4
        %v2128 = vsel %vm778, %v2127, %v2109
        %v2129 = vrot.slane %v2109, 4
        %v2130 = vsel %vm778, %v2115, %v2129
        %v2132 = vunpack.c.l.s4 1934713408
        %v2133 = vunpack.c.0.s8 %v2132
        %v2134 = vperm.slane %v2128, %v2133
        %v2136 = vunpack.c.l.s4 1934713408
        %v2137 = vunpack.c.0.s8 %v2136
        %v2138 = vperm.slane %v2130, %v2137
        %v2139 = vrot.slane %v2126, 4
        %v2140 = vsel %vm778, %v2139, %v2120
        %v2141 = vrot.slane %v2120, 4
        %v2142 = vsel %vm778, %v2126, %v2141
        %v2144 = vunpack.c.l.s4 1934713408
        %v2145 = vunpack.c.0.s8 %v2144
        %v2146 = vperm.slane %v2140, %v2145
        %v2148 = vunpack.c.l.s4 1934713408
        %v2149 = vunpack.c.0.s8 %v2148
        %v2150 = vperm.slane %v2142, %v2149
        %v2151 = vrot.slane %v2146, 4
        %v2152 = vsel %vm778, %v2151, %v2134
        %v2153 = vrot.slane %v2134, 4
        %v2154 = vsel %vm778, %v2146, %v2153
        %v2155 = vrot.slane %v2150, 4
        %v2156 = vsel %vm778, %v2155, %v2138
        %v2157 = vrot.slane %v2138, 4
        %v2158 = vsel %vm778, %v2150, %v2157
        %2160 = vrot.lane.b32.xlu0 %v2154, 8
        %v2161 = vpop.permute.xlu0 %2160
        %2164 = vrot.lane.b32.xlu0 %v2156, 16
        %v2165 = vpop.permute.xlu0 %2164
        %2168 = vrot.lane.b32.xlu0 %v2158, 24
        %v2169 = vpop.permute.xlu0 %2168
        %v2171 = vsel %vm1140, %v2152, %v2161
        %v2172 = vsel %vm1469, %v2171, %v2165
        %v2173 = vsel %vm1471, %v2172, %v2169
        %p2174 = scmp.eq.s32.totalorder %s37, 1
        // Predicated region
        $region77: #{tpu_custom_call.1} parent=63 // pred_check
          %p2175 = pneg %p2174
        $region78: #{tpu_custom_call.1} parent=63 // pred_check_branch
          %2177 = sbr.rel (%p2175) target = $region80
        $region79: #{tpu_custom_call.1} parent=63 // pred_region
          %2178 = vst.msk [vmem:[#allocation8] sm:$0xff] %vm1140, %v1261
          %2179 = vst.msk [vmem:[#allocation8 + $0x8] sm:$0xff] %vm1140, %v1262
          %2180 = vst.msk [vmem:[#allocation8 + $0x10] sm:$0xff] %vm1140, %v1263
          %2181 = vst.msk [vmem:[#allocation8 + $0x18] sm:$0xff] %vm1140, %v1264
          %s2182 = scalar_lea.vmem [#allocation8], 32
          %2183 = vst.msk [vmem:[%s2182] sm:$0xff] %vm1140, %v1965
          %2184 = vst.msk [vmem:[%s2182 + $0x8] sm:$0xff] %vm1140, %v1966
          %2185 = vst.msk [vmem:[%s2182 + $0x10] sm:$0xff] %vm1140, %v1967
          %2186 = vst.msk [vmem:[%s2182 + $0x18] sm:$0xff] %vm1140, %v1968
        $region80: #{tpu_custom_call.1} parent=63 // pred_fallthru
          _
        %v2187 = vpack.c.bf16 %v2173, %v1472
        %v2188 = vld [vmem:[%s502] sm:$0xf]
        %v2189 = vld [vmem:[%s502 + $0x4] sm:$0xf]
        %v2190 = vld [vmem:[%s502 + $0x8] sm:$0xf]
        %v2191 = vld [vmem:[%s502 + $0xc] sm:$0xf]
        %v2192 = vperm.slane %v667, 3
        %v2197 = vunpack.c.l.b16 %v2188
        %v2198 = vunpack.c.l.b16 %v2189
        %v2199 = vunpack.c.l.b16 %v2190
        %v2200 = vunpack.c.l.b16 %v2191
        %v2201 = vpack.c.b16 %v2198, %v2197
        %v2202 = vpack.c.b16 %v2200, %v2199
        %v2206 = vsel %vm687, %v2187, 0
        %2208 = vmatpush.bf16.msra.mxu0 0
        %2209 = vmatpush.bf16.msra.mxu0 0
        %2210 = vmatpush.bf16.msra.mxu0 0
        %2211 = vmatpush.bf16.msra.mxu0 0
        %2212 = vmatpush.bf16.msra.mxu0 0
        %2213 = vmatpush.bf16.msra.mxu0 0
        %2214 = vmatpush.bf16.msra.mxu0 %v2202
        %2215 = vmatpush.bf16.msra.mxu0 %v2201
        %2216 = vmatmul.bf16.gmra.mxu0 %v2206
        %v2217 = vpop.f32.mrf.mxu0
        %v2218 = vadd.f32 %v2192, %v2217
        %v2219 = vpop.f32.mrf.mxu0
        %v2220 = vadd.f32 %v2192, %v2219
        %2221 = vdwg.mxu0
        %v2222 = vadd.f32 %v664, %v2218
        %v2223 = vadd.f32 %v665, %v2220
        %v2224 = vsel %vm687, %v2222, 0.0
        %2225 = vadd.xlane.f32.xlu0 %v2224
        %v2226 = vpop.xlane.xlu0 %2225
        %v2227 = vsel %vm687, %v2223, 0.0
        %2228 = vadd.xlane.f32.xlu0 %v2227
        %v2229 = vpop.xlane.xlu0 %2228
        %v2230 = vrcp.pop 32.0
        %v2231 = vmul.f32 32.0, %v2230
        %v2232 = vsub.f32 1.0, %v2231
        %v2233 = vmul.f32 %v2230, %v2232
        %v2234 = vadd.f32 %v2230, %v2233
        %vm2235 = vweird.f32 %v2230
        %v2236 = vsel %vm2235, %v2230, %v2234
        %v2237 = vmul.f32 %v2226, %v2236
        %v2238 = vmul.f32 %v2229, %v2236
        %v2239 = vsub.f32 %v2222, %v2237
        %v2240 = vsub.f32 %v2223, %v2238
        %v2241 = vmul.f32 %v2239, %v2239
        %v2242 = vmul.f32 %v2240, %v2240
        %v2243 = vsel %vm687, %v2241, 0.0
        %2244 = vadd.xlane.f32.xlu0 %v2243
        %v2245 = vpop.xlane.xlu0 %2244
        %v2246 = vsel %vm687, %v2242, 0.0
        %2247 = vadd.xlane.f32.xlu0 %v2246
        %v2248 = vpop.xlane.xlu0 %2247
        %v2249 = vrcp.pop 31.0
        %v2250 = vmul.f32 31.0, %v2249
        %v2251 = vsub.f32 1.0, %v2250
        %v2252 = vmul.f32 %v2249, %v2251
        %v2253 = vadd.f32 %v2249, %v2252
        %vm2254 = vweird.f32 %v2249
        %v2255 = vsel %vm2254, %v2249, %v2253
        %v2256 = vmul.f32 %v2245, %v2255
        %v2257 = vmul.f32 %v2248, %v2255
        %v2258 = vrsqrt.pop %v2256
        %v2259 = vmul.f32 %v2258, %v2256
        %v2260 = vmul.f32 %v2259, %v2258
        %v2261 = vmul.f32 0.5, %v2260
        %v2262 = vsub.f32 1.5, %v2261
        %v2263 = vmul.f32 %v2258, %v2262
        %v2264 = vmul.f32 %v2256, %v2263
        %vm2265 = vcmp.eq.f32.partialorder %v2256, inf
        %v2266 = vsel %vm2265, %v2256, %v2264
        %vm2267 = vcmp.eq.f32.partialorder %v2256, 0.0
        %v2268 = vand.u32 %v2256, 2147483648
        %v2269 = vsel %vm2267, %v2268, %v2266
        %v2270 = vrsqrt.pop %v2257
        %v2271 = vmul.f32 %v2270, %v2257
        %v2272 = vmul.f32 %v2271, %v2270
        %v2273 = vmul.f32 0.5, %v2272
        %v2274 = vsub.f32 1.5, %v2273
        %v2275 = vmul.f32 %v2270, %v2274
        %v2276 = vmul.f32 %v2257, %v2275
        %vm2277 = vcmp.eq.f32.partialorder %v2257, inf
        %v2278 = vsel %vm2277, %v2257, %v2276
        %vm2279 = vcmp.eq.f32.partialorder %v2257, 0.0
        %v2280 = vand.u32 %v2257, 2147483648
        %v2281 = vsel %vm2279, %v2280, %v2278
        %v2282 = vadd.f32 %v2269, 1e-12
        %v2283 = vadd.f32 %v2281, 1e-12
        %v2284 = vrcp.pop %v2282
        %v2285 = vmul.f32 %v2282, %v2284
        %v2286 = vsub.f32 1.0, %v2285
        %v2287 = vmul.f32 %v2284, %v2286
        %v2288 = vadd.f32 %v2284, %v2287
        %vm2289 = vweird.f32 %v2282
        %vm2290 = vweird.f32 %v2284
        %vm2291 = vmor %vm2289, %vm2290
        %v2292 = vsel %vm2291, %v2284, %v2288
        %v2293 = vand.u32 2147483647, %v2282
        %vm2294 = vcmp.eq.f32.partialorder %v2293, 8.507059e+37
        %v2295 = vand.u32 %v2282, 2147483648
        %v2296 = vor.u32 1.1754944e-38, %v2295
        %v2297 = vsel %vm2294, %v2296, %v2292
        %v2298 = vmul.f32 %v2239, %v2297
        %v2299 = vrcp.pop %v2283
        %v2300 = vmul.f32 %v2283, %v2299
        %v2301 = vsub.f32 1.0, %v2300
        %v2302 = vmul.f32 %v2299, %v2301
        %v2303 = vadd.f32 %v2299, %v2302
        %vm2304 = vweird.f32 %v2283
        %vm2305 = vweird.f32 %v2299
        %vm2306 = vmor %vm2304, %vm2305
        %v2307 = vsel %vm2306, %v2299, %v2303
        %v2308 = vand.u32 2147483647, %v2283
        %vm2309 = vcmp.eq.f32.partialorder %v2308, 8.507059e+37
        %v2310 = vand.u32 %v2283, 2147483648
        %v2311 = vor.u32 1.1754944e-38, %v2310
        %v2312 = vsel %vm2309, %v2311, %v2307
        %v2313 = vmul.f32 %v2240, %v2312
        %v2314 = vperm.slane %v667, 4
        %v2315 = vmul.f32 %v2314, %v2298
        %v2316 = vmul.f32 %v2314, %v2313
        %v2317 = vperm.slane %v667, 5
        %v2318 = vadd.f32 %v2315, %v2317
        %v2319 = vadd.f32 %v2316, %v2317
        %v2320 = vpack.c.bf16 %v2319, %v2318
        %v2321 = vld [vmem:[%s512] sm:$0xf]
        %v2322 = vld [vmem:[%s512 + $0x4] sm:$0xf]
        %v2323 = vld [vmem:[%s512 + $0x8] sm:$0xf]
        %v2324 = vld [vmem:[%s512 + $0xc] sm:$0xf]
        %v2326 = vperm.slane %v669, 0
        %v2332 = vunpack.c.l.b16 %v2321
        %v2333 = vunpack.c.l.b16 %v2322
        %v2334 = vunpack.c.l.b16 %v2323
        %v2335 = vunpack.c.l.b16 %v2324
        %v2336 = vpack.c.b16 %v2333, %v2332
        %v2337 = vpack.c.b16 %v2335, %v2334
        %v2341 = vsel %vm687, %v2320, 0
        %2343 = vmatpush.bf16.msra.mxu0 0
        %2344 = vmatpush.bf16.msra.mxu0 0
        %2345 = vmatpush.bf16.msra.mxu0 0
        %2346 = vmatpush.bf16.msra.mxu0 0
        %2347 = vmatpush.bf16.msra.mxu0 0
        %2348 = vmatpush.bf16.msra.mxu0 0
        %2349 = vmatpush.bf16.msra.mxu0 %v2337
        %2350 = vmatpush.bf16.msra.mxu0 %v2336
        %2351 = vmatmul.bf16.gmra.mxu0 %v2341
        %v2352 = vpop.f32.mrf.mxu0
        %v2353 = vadd.f32 %v2326, %v2352
        %v2354 = vpop.f32.mrf.mxu0
        %v2355 = vadd.f32 %v2326, %v2354
        %2356 = vdwg.mxu0
        %v2357 = vmax.f32 %v2353, 0.0
        %v2358 = vmax.f32 %v2355, 0.0
        %v2359 = vpack.c.bf16 %v2358, %v2357
        %v2360 = vld [vmem:[%s612] sm:$0xf]
        %v2361 = vld [vmem:[%s612 + $0x4] sm:$0xf]
        %v2362 = vld [vmem:[%s612 + $0x8] sm:$0xf]
        %v2363 = vld [vmem:[%s612 + $0xc] sm:$0xf]
        %v2364 = vld [vmem:[%s612 + $0x10] sm:$0xf]
        %v2365 = vld [vmem:[%s612 + $0x14] sm:$0xf]
        %v2366 = vld [vmem:[%s612 + $0x18] sm:$0xf]
        %v2367 = vld [vmem:[%s612 + $0x1c] sm:$0xf]
        %v2368 = vperm.slane %v667, 6
        %v2377 = vunpack.c.l.b16 %v2360
        %v2378 = vunpack.c.l.b16 %v2361
        %v2379 = vunpack.c.l.b16 %v2362
        %v2380 = vunpack.c.l.b16 %v2363
        %v2381 = vunpack.c.l.b16 %v2364
        %v2382 = vunpack.c.l.b16 %v2365
        %v2383 = vunpack.c.l.b16 %v2366
        %v2384 = vunpack.c.l.b16 %v2367
        %v2385 = vpack.c.b16 %v2378, %v2377
        %v2386 = vpack.c.b16 %v2380, %v2379
        %v2387 = vpack.c.b16 %v2382, %v2381
        %v2388 = vpack.c.b16 %v2384, %v2383
        %vm2393 = vcmask 523264
        %v2395 = vsel %vm2393, %v2359, 0
        %2397 = vmatpush.bf16.msra.mxu0 0
        %2398 = vmatpush.bf16.msra.mxu0 0
        %2399 = vmatpush.bf16.msra.mxu0 0
        %2400 = vmatpush.bf16.msra.mxu0 0
        %2401 = vmatpush.bf16.msra.mxu0 %v2388
        %2402 = vmatpush.bf16.msra.mxu0 %v2387
        %2403 = vmatpush.bf16.msra.mxu0 %v2386
        %2404 = vmatpush.bf16.msra.mxu0 %v2385
        %2405 = vmatmul.bf16.gmra.mxu0 %v2395
        %v2406 = vpop.f32.mrf.mxu0
        %v2407 = vadd.f32 %v2368, %v2406
        %v2408 = vpop.f32.mrf.mxu0
        %v2409 = vadd.f32 %v2368, %v2408
        %2410 = vdwg.mxu0
        %v2411 = vadd.f32 %v2318, %v2407
        %v2412 = vadd.f32 %v2319, %v2409
        %v2413 = vsel %vm687, %v2411, 0.0
        %2414 = vadd.xlane.f32.xlu0 %v2413
        %v2415 = vpop.xlane.xlu0 %2414
        %v2416 = vsel %vm687, %v2412, 0.0
        %2417 = vadd.xlane.f32.xlu0 %v2416
        %v2418 = vpop.xlane.xlu0 %2417
        %v2419 = vmul.f32 %v2415, %v2236
        %v2420 = vmul.f32 %v2418, %v2236
        %v2421 = vsub.f32 %v2411, %v2419
        %v2422 = vsub.f32 %v2412, %v2420
        %v2423 = vmul.f32 %v2421, %v2421
        %v2424 = vmul.f32 %v2422, %v2422
        %v2425 = vsel %vm687, %v2423, 0.0
        %2426 = vadd.xlane.f32.xlu0 %v2425
        %v2427 = vpop.xlane.xlu0 %2426
        %v2428 = vsel %vm687, %v2424, 0.0
        %2429 = vadd.xlane.f32.xlu0 %v2428
        %v2430 = vpop.xlane.xlu0 %2429
        %v2431 = vmul.f32 %v2427, %v2255
        %v2432 = vmul.f32 %v2430, %v2255
        %v2433 = vrsqrt.pop %v2431
        %v2434 = vmul.f32 %v2433, %v2431
        %v2435 = vmul.f32 %v2434, %v2433
        %v2436 = vmul.f32 0.5, %v2435
        %v2437 = vsub.f32 1.5, %v2436
        %v2438 = vmul.f32 %v2433, %v2437
        %v2439 = vmul.f32 %v2431, %v2438
        %vm2440 = vcmp.eq.f32.partialorder %v2431, inf
        %v2441 = vsel %vm2440, %v2431, %v2439
        %vm2442 = vcmp.eq.f32.partialorder %v2431, 0.0
        %v2443 = vand.u32 %v2431, 2147483648
        %v2444 = vsel %vm2442, %v2443, %v2441
        %v2445 = vrsqrt.pop %v2432
        %v2446 = vmul.f32 %v2445, %v2432
        %v2447 = vmul.f32 %v2446, %v2445
        %v2448 = vmul.f32 0.5, %v2447
        %v2449 = vsub.f32 1.5, %v2448
        %v2450 = vmul.f32 %v2445, %v2449
        %v2451 = vmul.f32 %v2432, %v2450
        %vm2452 = vcmp.eq.f32.partialorder %v2432, inf
        %v2453 = vsel %vm2452, %v2432, %v2451
        %vm2454 = vcmp.eq.f32.partialorder %v2432, 0.0
        %v2455 = vand.u32 %v2432, 2147483648
        %v2456 = vsel %vm2454, %v2455, %v2453
        %v2457 = vadd.f32 %v2444, 1e-12
        %v2458 = vadd.f32 %v2456, 1e-12
        %v2459 = vrcp.pop %v2457
        %v2460 = vmul.f32 %v2457, %v2459
        %v2461 = vsub.f32 1.0, %v2460
        %v2462 = vmul.f32 %v2459, %v2461
        %v2463 = vadd.f32 %v2459, %v2462
        %vm2464 = vweird.f32 %v2457
        %vm2465 = vweird.f32 %v2459
        %vm2466 = vmor %vm2464, %vm2465
        %v2467 = vsel %vm2466, %v2459, %v2463
        %v2468 = vand.u32 2147483647, %v2457
        %vm2469 = vcmp.eq.f32.partialorder %v2468, 8.507059e+37
        %v2470 = vand.u32 %v2457, 2147483648
        %v2471 = vor.u32 1.1754944e-38, %v2470
        %v2472 = vsel %vm2469, %v2471, %v2467
        %v2473 = vmul.f32 %v2421, %v2472
        %v2474 = vrcp.pop %v2458
        %v2475 = vmul.f32 %v2458, %v2474
        %v2476 = vsub.f32 1.0, %v2475
        %v2477 = vmul.f32 %v2474, %v2476
        %v2478 = vadd.f32 %v2474, %v2477
        %vm2479 = vweird.f32 %v2458
        %vm2480 = vweird.f32 %v2474
        %vm2481 = vmor %vm2479, %vm2480
        %v2482 = vsel %vm2481, %v2474, %v2478
        %v2483 = vand.u32 2147483647, %v2458
        %vm2484 = vcmp.eq.f32.partialorder %v2483, 8.507059e+37
        %v2485 = vand.u32 %v2458, 2147483648
        %v2486 = vor.u32 1.1754944e-38, %v2485
        %v2487 = vsel %vm2484, %v2486, %v2482
        %v2488 = vmul.f32 %v2422, %v2487
        %v2489 = vperm.slane %v667, 7
        %v2490 = vmul.f32 %v2489, %v2473
        %v2491 = vmul.f32 %v2489, %v2488
        %v2492 = vperm.slane %v668, 0
        %v2493 = vadd.f32 %v2490, %v2492
        %v2494 = vadd.f32 %v2491, %v2492
        %2495 = vst.msk [vmem:[#allocation7] sm:$0xff] %vm687, %v2493
        %2496 = vst.msk [vmem:[#allocation7 + $0x8] sm:$0xff] %vm687, %v2494
        // Predicated region
        $region81: #{tpu_custom_call.1} parent=63 // pred_check
          %p2497 = pneg %p338
        $region82: #{tpu_custom_call.1} parent=63 // pred_check_branch
          %2499 = sbr.rel (%p2497) target = $region84
        $region83: #{tpu_custom_call.1} parent=63 // pred_region
          %s2500 = smul.u32 2, %s36
          %2502 = vsyncadd [#allocation4], 0
          %s2503 = smul.addr %s2500, 8
          %s2504 = scalar_lea.hbm %s11, %s2503
          %s2505 = sshll.u32 [#allocation7], 4
          %s2506 = int_to_ptr.vmem [resolvable:$true] %s2505
          %s2507 = sshll.u32 %s2504, 4
          %s2508 = int_to_ptr.hbm [resolvable:$true] %s2507
          %2513 = dma.vmem_to_hbm [thread:$0]  %s2506, 256, %s2508, [#allocation4], 128, 128, 8
        $region84: #{tpu_custom_call.1} parent=63 // pred_fallthru
          _
        // Predicated region
        $region85: #{tpu_custom_call.1} parent=63 // pred_check
          %p2514 = pneg %p364
        $region86: #{tpu_custom_call.1} parent=63 // pred_check_branch
          %2516 = sbr.rel (%p2514) target = $region88
        $region87: #{tpu_custom_call.1} parent=63 // pred_region
          %s2517 = smul.u32 2, %s36
          %2519 = vsyncadd [#allocation9], 0
          %s2520 = smul.addr %s2517, 4
          %s2521 = smul.addr %s2520, 8
          %s2522 = scalar_lea.hbm %s12, %s2521
          %s2523 = sshll.u32 [#allocation8], 4
          %s2524 = int_to_ptr.vmem [resolvable:$true] %s2523
          %s2525 = sshll.u32 %s2522, 4
          %s2526 = int_to_ptr.hbm [resolvable:$true] %s2525
          %2531 = dma.vmem_to_hbm [thread:$0]  %s2524, 1024, %s2526, [#allocation9], 128, 128, 8
        $region88: #{tpu_custom_call.1} parent=63 // pred_fallthru
          _
        // Predicated region
        $region89: #{tpu_custom_call.1} parent=63 // pred_check
          %p2532 = pneg %p338
        $region90: #{tpu_custom_call.1} parent=63 // pred_check_branch
          %2534 = sbr.rel (%p2532) target = $region92
        $region91: #{tpu_custom_call.1} parent=63 // pred_region
          %2536 = dma.done [#allocation4], 256
        $region92: #{tpu_custom_call.1} parent=63 // pred_fallthru
          _
        // Predicated region
        $region93: #{tpu_custom_call.1} parent=63 // pred_check
          %p2537 = pneg %p364
        $region94: #{tpu_custom_call.1} parent=63 // pred_check_branch
          %2539 = sbr.rel (%p2537) target = $region96
        $region95: #{tpu_custom_call.1} parent=63 // pred_region
          %2541 = dma.done [#allocation9], 1024
        $region96: #{tpu_custom_call.1} parent=63 // pred_fallthru
          _
      $region64: #{tpu_custom_call.1} parent=5 // pred_fallthru
        _
      %p2542 = scmp.le.s32.totalorder 2, %s27
      // Predicated region
      $region97: #{tpu_custom_call.1} parent=5 // pred_check
        %p2543 = pneg %p2542
      $region98: #{tpu_custom_call.1} parent=5 // pred_check_branch
        %2545 = sbr.rel (%p2543) target = $region100
      $region99: #{tpu_custom_call.1} parent=5 // pred_region
        %s2546 = ssub.s32 %s27, 2
      $region100: #{tpu_custom_call.1} parent=5 // pred_fallthru
        _
    $region6: #{tpu_custom_call.1} parent=1 // loop_footer
      %s31 = sadd.s32 1, %s27
    $region7: #{tpu_custom_call.1} parent=1 // loop_footer_branch
      %26 = sbr.rel target = $region3
    $region8: #{tpu_custom_call.1} parent=1 // loop_exit
      _
    %2547 = vsyncpa [#allocation3], 1
    %s2548 = scalar_lea.sflag [#allocation3], 1
    %2549 = vsyncpa %s2548, 1
    %2550 = vsyncpa [#allocation6], 1
    %s2551 = scalar_lea.sflag [#allocation6], 1
    %2552 = vsyncpa %s2551, 1
    %2553 = vsyncpa [#allocation4], 1
    %s2554 = scalar_lea.sflag [#allocation4], 1
    %2555 = vsyncpa %s2554, 1
    %2556 = vsyncpa [#allocation9], 1

</llo_original>
